<compile_context>
chip_gen: v7x
topology: tpu7x:2x2x1
jax: 0.10.0
libtpu: 0.0.40
codegen_flags: <defaults>
</compile_context>

<pallas_src>
import jax
import jax.numpy as jnp
import numpy as np
from jax.experimental import pallas as pl
from jax.experimental.pallas import tpu as pltpu

BN_EPS = 1e-5
K = 8          # conv kernel size (module spec)
PAD1 = 3       # conv1 padding (module spec)
PAD2 = 4       # conv2 padding (module spec)


def _round_up(v, m):
    return (v + m - 1) // m * m


def _tpu_vmem_capacity_bytes():
    try:
        return int(pltpu.get_tpu_info().vmem_capacity_bytes)
    except Exception:
        return 64 * 1024 * 1024      # conservative (v7x-class) fallback


def residual_block(x, params, *, compute_dtype=jnp.bfloat16):
    """x: (N, Cin, L) in PyTorch NCL layout. Returns (N, Cout, L) float32."""
    (w_res, b_res, w1, b1, g1, be1, w2, b2, g2, be2) = params
    N, Cin, L = x.shape
    Cout = w1.shape[0]
    L1 = L - 1                          # conv1 (k=8, pad=3) output length
    # Sublane-aligned per-batch block: each batch owns Lblk rows; rows past
    # the valid sequence stay zero and double as the convs' zero padding.
    Lblk = _round_up(max(L + PAD1, L1 + PAD2), 8)
    R = N * Lblk
    # TODO(synk): when the real Cout lands in (128, 256], rounding Cp to 256 on
    # v6e/v7x (256-wide MXU) fills a full pass; 128-multiples kept here.
    Cp = _round_up(Cout, 128)
    f32 = jnp.float32
    cdt = compute_dtype

    # Generation-aware knobs (v7x-class: 64 MiB VMEM, MRB; v5e/v6e: 128 MiB).
    vmem_cap = _tpu_vmem_capacity_bytes()
    small_vmem = vmem_cap <= 64 * 1024 * 1024
    conv2_fused = not small_vmem              # deep fused contraction on v5e/v6e
    vmem_limit = int(min(vmem_cap // 2, 96 * 1024 * 1024))

    n_valid1 = float(N * L1)                  # BN1 true row count
    n_valid2 = float(N * L)                   # BN2 true row count

    def kernel(x_ref, m1_ref, m2_ref, wres_ref, bres_ref, w1_ref, b1_ref,
               g1_ref, be1_ref, w2_ref, b2_ref, g2_ref, be2_ref, o_ref):

        def elu(v):
            # TODO(synk): jnp.expm1 would track torch ELU more tightly for tiny
            # negative inputs; exp(v)-1 kept for a guaranteed Mosaic lowering.
            return jnp.where(v > 0, v, jnp.exp(v) - 1.0)

        def bn_elu(v, g, b, mask, count):
            # Single pass over v: masked sum & sum-of-squares, biased variance
            # via E[x^2] - mu^2, divided by the true (unpadded) row count.
            vm = v * mask
            s1 = jnp.sum(vm, axis=0, keepdims=True)
            s2 = jnp.sum(vm * vm, axis=0, keepdims=True)
            inv_n = 1.0 / count
            mu = s1 * inv_n
            var = s2 * inv_n - mu * mu
            return elu(g * (v - mu) * jax.lax.rsqrt(var + BN_EPS) + b)

        def conv_taps(act_f32, w_ref, b_row, pad, fused):
            # Tap t of a k=K conv needs act[row + t - pad]; with every batch
            # in its own zero-tailed Lblk-row block, that is one circular
            # sublane roll of the whole slab per tap (XLU), no per-batch
            # slicing and no boundary masking for the conv itself.
            c = act_f32.shape[-1]
            taps = []
            for t in range(K):
                shift = (pad - t) % R
                tap = act_f32 if shift == 0 else pltpu.roll(act_f32, shift, 0)
                # Cast per tap so the patch / MXU operands are compute_dtype.
                taps.append(tap.astype(cdt))
            if fused:
                patch = jnp.concatenate(taps, axis=-1)         # (R, K*c) cdt
                out = jnp.dot(patch, w_ref[...], preferred_element_type=f32)
            else:
                # v7x path: no patch materialization, K shallow matmuls.
                out = jnp.zeros((R, Cp), f32)
                for t in range(K):
                    out = out + jnp.dot(taps[t], w_ref[pl.ds(t * c, c), :],
                                        preferred_element_type=f32)
            return out + b_row

        x2d = x_ref[...]                                       # (R, Cin) f32
        mask1 = m1_ref[...]                                    # (R, 1) f32
        mask2 = m2_ref[...]                                    # (R, 1) f32

        # residual = Conv1d(k=1): one matmul with the shared weight.
        residual = jnp.dot(x2d.astype(cdt), wres_ref[...],
                           preferred_element_type=f32) + bres_ref[...]

        # conv1 (k=8, pad=3) + bn1 + elu1.  Rows past L1 in each block are
        # zeroed after ELU so conv2's taps and bn2 never see them.
        out1 = conv_taps(x2d, w1_ref, b1_ref[...], PAD1, fused=True)
        h1 = bn_elu(out1, g1_ref[...], be1_ref[...], mask1, n_valid1) * mask1

        # conv2 (k=8, pad=4) + residual + bn2 + elu2.
        # TODO(synk): self.downsample is None in this configuration; an
        # arbitrary user-supplied downsample module is not translated.
        out2 = conv_taps(h1, w2_ref, b2_ref[...], PAD2, fused=conv2_fused)
        out2 = out2 + residual
        o_ref[...] = bn_elu(out2, g2_ref[...], be2_ref[...], mask2, n_valid2)
        # TODO(synk): BatchNorm1d running_mean/var buffers are not updated
        # (forward normalization uses batch statistics, i.e. training mode).

    def pad_c(v):   # zero-pad trailing (channel) axis: Cout -> Cp
        return jnp.pad(v, [(0, 0)] * (v.ndim - 1) + [(0, Cp - Cout)])

    def vec(v):     # per-channel parameter -> (1, Cp) f32 row
        return pad_c(v.reshape(1, -1)).astype(f32)

    # Activations: sublane-aligned per-batch blocks, (N*Lblk, Cin) f32 rows.
    # TODO(synk): at realistic sizes fold this NCL<->row relayout into the
    # kernel (grid over N + in-kernel XLU transpose) instead of wrapper-side.
    x_rows = jnp.transpose(x, (0, 2, 1)).astype(f32)            # (N, L, Cin)
    x_rows = jnp.pad(x_rows, ((0, 0), (0, Lblk - L), (0, 0)))   # zero tail rows
    x2d_host = x_rows.reshape(R, Cin)

    # Row-validity masks (block-local position), built host-side once.
    local = np.arange(R, dtype=np.int64) % Lblk
    mask1 = jnp.asarray((local < L1).astype(np.float32).reshape(R, 1))
    mask2 = jnp.asarray((local < L).astype(np.float32).reshape(R, 1))

    # Conv weights: tap-major / in-channel-minor rows, Cp lanes, compute dtype.
    wres_f = pad_c(jnp.transpose(w_res[:, :, 0], (1, 0))).astype(cdt)              # (Cin, Cp)
    w1_f = pad_c(jnp.transpose(w1, (2, 1, 0)).reshape(K * Cin, Cout)).astype(cdt)  # (K*Cin, Cp)
    w2_f = jnp.pad(jnp.transpose(w2, (2, 1, 0)),                                   # (K, Cout, Cout)
                   ((0, 0), (0, Cp - Cout), (0, Cp - Cout))
                   ).reshape(K * Cp, Cp).astype(cdt)                               # (K*Cp, Cp)

    vmem = pl.BlockSpec(memory_space=pltpu.MemorySpace.VMEM)
    # TODO(synk): at realistic (N, L) add a row-tile grid axis marked
    # "parallel" with two-phase BN (per-tile sum/sum-sq, then normalize) so
    # megacore/v7x shards the work; at these shapes a single grid point wins.
    out2d = pl.pallas_call(
        kernel,
        out_shape=jax.ShapeDtypeStruct((R, Cp), f32),
        in_specs=[vmem] * 13,
        out_specs=vmem,
        compiler_params=pltpu.CompilerParams(vmem_limit_bytes=vmem_limit),
    )(x2d_host, mask1, mask2, wres_f, vec(b_res), w1_f, vec(b1), vec(g1),
      vec(be1), w2_f, vec(b2), vec(g2), vec(be2))

    # Drop row/channel padding, back to PyTorch NCL layout.
    out = out2d.reshape(N, Lblk, Cp)[:, :L, :Cout]
    return jnp.transpose(out, (0, 2, 1))


def reference(x, params):
    """Pure-JAX reference (lax conv) mirroring the PyTorch forward (f32)."""
    (w_res, b_res, w1, b1, g1, be1, w2, b2, g2, be2) = params

    def conv1d(inp, w, b, pad):
        y = jax.lax.conv_general_dilated(
            inp, w, window_strides=(1,), padding=[(pad, pad)],
            dimension_numbers=('NCH', 'OIH', 'NCH'))
        return y + b[None, :, None]

    def bn(v, g, b):
        mu = v.mean(axis=(0, 2), keepdims=True)
        var = ((v - mu) ** 2).mean(axis=(0, 2), keepdims=True)
        return g[None, :, None] * (v - mu) * jax.lax.rsqrt(var + BN_EPS) \
            + b[None, :, None]

    def elu(v):
        return jnp.where(v > 0, v, jnp.exp(v) - 1.0)

    residual = conv1d(x, w_res, b_res, 0)
    out = elu(bn(conv1d(x, w1, b1, PAD1), g1, be1))
    out = conv1d(out, w2, b2, PAD2)
    out = out + residual
    return elu(bn(out, g2, be2))


if __name__ == "__main__":
    N, Cin, Cout, L = 2, 4, 8, 16
    keys = jax.random.split(jax.random.PRNGKey(0), 11)

    x = jax.random.normal(keys[0], (N, Cin, L), jnp.float32)
    w_res = 0.3 * jax.random.normal(keys[1], (Cout, Cin, 1), jnp.float32)
    b_res = 0.1 * jax.random.normal(keys[2], (Cout,), jnp.float32)
    w1 = 0.2 * jax.random.normal(keys[3], (Cout, Cin, K), jnp.float32)
    b1 = 0.1 * jax.random.normal(keys[4], (Cout,), jnp.float32)
    g1 = 1.0 + 0.1 * jax.random.normal(keys[5], (Cout,), jnp.float32)
    be1 = 0.1 * jax.random.normal(keys[6], (Cout,), jnp.float32)
    w2 = 0.2 * jax.random.normal(keys[7], (Cout, Cout, K), jnp.float32)
    b2 = 0.1 * jax.random.normal(keys[8], (Cout,), jnp.float32)
    g2 = 1.0 + 0.1 * jax.random.normal(keys[9], (Cout,), jnp.float32)
    be2 = 0.1 * jax.random.normal(keys[10], (Cout,), jnp.float32)

    params = (w_res, b_res, w1, b1, g1, be1, w2, b2, g2, be2)

    ref = jax.block_until_ready(reference(x, params))

    # f32 MXU operands: tight check against the f32 reference.
    out_f32 = jax.block_until_ready(
        residual_block(x, params, compute_dtype=jnp.float32))
    assert out_f32.shape == (N, Cout, L)
    np.testing.assert_allclose(np.asarray(out_f32), np.asarray(ref),
                               rtol=1e-4, atol=1e-4)

    # Default path: bf16 MXU operands + f32 accumulation / BN / ELU.
    out_bf16 = jax.block_until_ready(residual_block(x, params))
    assert out_bf16.shape == (N, Cout, L)
    np.testing.assert_allclose(np.asarray(out_bf16), np.asarray(ref),
                               rtol=5e-2, atol=5e-2)

    print("KERNEL_OK")
</pallas_src>

<mosaic_0001>
module attributes {stable_mosaic.version = 11 : i64} {
  func.func @kernel(%arg0: memref<48x4xf32, #tpu.memory_space<vmem>>, %arg1: memref<48x1xf32, #tpu.memory_space<vmem>>, %arg2: memref<48x1xf32, #tpu.memory_space<vmem>>, %arg3: memref<4x128xf32, #tpu.memory_space<vmem>>, %arg4: memref<1x128xf32, #tpu.memory_space<vmem>>, %arg5: memref<32x128xf32, #tpu.memory_space<vmem>>, %arg6: memref<1x128xf32, #tpu.memory_space<vmem>>, %arg7: memref<1x128xf32, #tpu.memory_space<vmem>>, %arg8: memref<1x128xf32, #tpu.memory_space<vmem>>, %arg9: memref<1024x128xf32, #tpu.memory_space<vmem>>, %arg10: memref<1x128xf32, #tpu.memory_space<vmem>>, %arg11: memref<1x128xf32, #tpu.memory_space<vmem>>, %arg12: memref<1x128xf32, #tpu.memory_space<vmem>>, %arg13: memref<48x128xf32, #tpu.memory_space<vmem>>) attributes {dimension_semantics = [], scalar_prefetch = 0 : i64, scratch_operands = 0 : i64, tpu.core_type = #tpu.core_type<tc>} {
    %c0 = arith.constant 0 : index
    %c0_0 = arith.constant 0 : index
    %0 = vector.load %arg0[%c0, %c0_0] : memref<48x4xf32, #tpu.memory_space<vmem>>, vector<48x4xf32>
    %c0_1 = arith.constant 0 : index
    %c0_2 = arith.constant 0 : index
    %1 = vector.load %arg1[%c0_1, %c0_2] : memref<48x1xf32, #tpu.memory_space<vmem>>, vector<48x1xf32>
    %c0_3 = arith.constant 0 : index
    %c0_4 = arith.constant 0 : index
    %2 = vector.load %arg2[%c0_3, %c0_4] : memref<48x1xf32, #tpu.memory_space<vmem>>, vector<48x1xf32>
    %c0_5 = arith.constant 0 : index
    %c0_6 = arith.constant 0 : index
    %3 = vector.load %arg3[%c0_5, %c0_6] : memref<4x128xf32, #tpu.memory_space<vmem>>, vector<4x128xf32>
    %cst = arith.constant dense<0.000000e+00> : vector<48x128xf32>
    %4 = tpu.matmul %0, %3, %cst {dimension_numbers = #tpu.dot_dimension_numbers<[1], [0], [0], [1], [0, 0, 1, 1], [], []>} : vector<48x4xf32>, vector<4x128xf32>, vector<48x128xf32> -> vector<48x128xf32>
    %c0_7 = arith.constant 0 : index
    %c0_8 = arith.constant 0 : index
    %5 = vector.load %arg4[%c0_7, %c0_8] : memref<1x128xf32, #tpu.memory_space<vmem>>, vector<1x128xf32>
    %6 = vector.broadcast %5 : vector<1x128xf32> to vector<48x128xf32>
    %7 = arith.addf %4, %6 : vector<48x128xf32>
    %c0_9 = arith.constant 0 : index
    %c0_10 = arith.constant 0 : index
    %8 = vector.load %arg6[%c0_9, %c0_10] : memref<1x128xf32, #tpu.memory_space<vmem>>, vector<1x128xf32>
    %c3_i32 = arith.constant 3 : i32
    %9 = tpu.dynamic_rotate %0 by %c3_i32 dim 0 : vector<48x4xf32>, i32 -> vector<48x4xf32>
    %c2_i32 = arith.constant 2 : i32
    %10 = tpu.dynamic_rotate %0 by %c2_i32 dim 0 : vector<48x4xf32>, i32 -> vector<48x4xf32>
    %c1_i32 = arith.constant 1 : i32
    %11 = tpu.dynamic_rotate %0 by %c1_i32 dim 0 : vector<48x4xf32>, i32 -> vector<48x4xf32>
    %c47_i32 = arith.constant 47 : i32
    %12 = tpu.dynamic_rotate %0 by %c47_i32 dim 0 : vector<48x4xf32>, i32 -> vector<48x4xf32>
    %c46_i32 = arith.constant 46 : i32
    %13 = tpu.dynamic_rotate %0 by %c46_i32 dim 0 : vector<48x4xf32>, i32 -> vector<48x4xf32>
    %c45_i32 = arith.constant 45 : i32
    %14 = tpu.dynamic_rotate %0 by %c45_i32 dim 0 : vector<48x4xf32>, i32 -> vector<48x4xf32>
    %c44_i32 = arith.constant 44 : i32
    %15 = tpu.dynamic_rotate %0 by %c44_i32 dim 0 : vector<48x4xf32>, i32 -> vector<48x4xf32>
    %16 = tpu.concatenate %9, %10, %11, %0, %12, %13, %14, %15 in 1 : vector<48x4xf32>, vector<48x4xf32>, vector<48x4xf32>, vector<48x4xf32>, vector<48x4xf32>, vector<48x4xf32>, vector<48x4xf32>, vector<48x4xf32> -> vector<48x32xf32>
    %c0_11 = arith.constant 0 : index
    %c0_12 = arith.constant 0 : index
    %17 = vector.load %arg5[%c0_11, %c0_12] : memref<32x128xf32, #tpu.memory_space<vmem>>, vector<32x128xf32>
    %cst_13 = arith.constant dense<0.000000e+00> : vector<48x128xf32>
    %18 = tpu.matmul %16, %17, %cst_13 {dimension_numbers = #tpu.dot_dimension_numbers<[1], [0], [0], [1], [0, 0, 1, 1], [], []>} : vector<48x32xf32>, vector<32x128xf32>, vector<48x128xf32> -> vector<48x128xf32>
    %19 = vector.broadcast %8 : vector<1x128xf32> to vector<48x128xf32>
    %20 = arith.addf %18, %19 : vector<48x128xf32>
    %c0_14 = arith.constant 0 : index
    %c0_15 = arith.constant 0 : index
    %21 = vector.load %arg7[%c0_14, %c0_15] : memref<1x128xf32, #tpu.memory_space<vmem>>, vector<1x128xf32>
    %c0_16 = arith.constant 0 : index
    %c0_17 = arith.constant 0 : index
    %22 = vector.load %arg8[%c0_16, %c0_17] : memref<1x128xf32, #tpu.memory_space<vmem>>, vector<1x128xf32>
    %23 = vector.broadcast %1 : vector<48x1xf32> to vector<48x128xf32>
    %24 = arith.mulf %20, %23 : vector<48x128xf32>
    %cst_18 = arith.constant dense<0.000000e+00> : vector<128xf32>
    %25 = vector.multi_reduction <add>, %24, %cst_18 [0] : vector<48x128xf32> to vector<128xf32>
    %26 = vector.shape_cast %25 : vector<128xf32> to vector<1x128xf32>
    %27 = arith.mulf %24, %24 : vector<48x128xf32>
    %cst_19 = arith.constant dense<0.000000e+00> : vector<128xf32>
    %28 = vector.multi_reduction <add>, %27, %cst_19 [0] : vector<48x128xf32> to vector<128xf32>
    %29 = vector.shape_cast %28 : vector<128xf32> to vector<1x128xf32>
    %cst_20 = arith.constant 0.0333333351 : f32
    %30 = vector.broadcast %cst_20 : f32 to vector<1x128xf32>
    %31 = arith.mulf %26, %30 : vector<1x128xf32>
    %cst_21 = arith.constant 0.0333333351 : f32
    %32 = vector.broadcast %cst_21 : f32 to vector<1x128xf32>
    %33 = arith.mulf %29, %32 : vector<1x128xf32>
    %34 = arith.mulf %31, %31 : vector<1x128xf32>
    %35 = arith.subf %33, %34 : vector<1x128xf32>
    %36 = vector.broadcast %31 : vector<1x128xf32> to vector<48x128xf32>
    %37 = arith.subf %20, %36 : vector<48x128xf32>
    %38 = vector.broadcast %21 : vector<1x128xf32> to vector<48x128xf32>
    %39 = arith.mulf %38, %37 : vector<48x128xf32>
    %cst_22 = arith.constant 9.99999974E-6 : f32
    %40 = vector.broadcast %cst_22 : f32 to vector<1x128xf32>
    %41 = arith.addf %35, %40 : vector<1x128xf32>
    %42 = math.rsqrt %41 : vector<1x128xf32>
    %43 = vector.broadcast %42 : vector<1x128xf32> to vector<48x128xf32>
    %44 = arith.mulf %39, %43 : vector<48x128xf32>
    %45 = vector.broadcast %22 : vector<1x128xf32> to vector<48x128xf32>
    %46 = arith.addf %44, %45 : vector<48x128xf32>
    %cst_23 = arith.constant 0.000000e+00 : f32
    %47 = vector.broadcast %cst_23 : f32 to vector<48x128xf32>
    %48 = arith.cmpf ogt, %46, %47 : vector<48x128xf32>
    %49 = math.exp %46 : vector<48x128xf32>
    %cst_24 = arith.constant 1.000000e+00 : f32
    %50 = vector.broadcast %cst_24 : f32 to vector<48x128xf32>
    %51 = arith.subf %49, %50 : vector<48x128xf32>
    %52 = arith.select %48, %46, %51 : vector<48x128xi1>, vector<48x128xf32>
    %53 = vector.broadcast %1 : vector<48x1xf32> to vector<48x128xf32>
    %54 = arith.mulf %52, %53 : vector<48x128xf32>
    %c0_25 = arith.constant 0 : index
    %c0_26 = arith.constant 0 : index
    %55 = vector.load %arg10[%c0_25, %c0_26] : memref<1x128xf32, #tpu.memory_space<vmem>>, vector<1x128xf32>
    %c4_i32 = arith.constant 4 : i32
    %56 = tpu.dynamic_rotate %54 by %c4_i32 dim 0 : vector<48x128xf32>, i32 -> vector<48x128xf32>
    %c3_i32_27 = arith.constant 3 : i32
    %57 = tpu.dynamic_rotate %54 by %c3_i32_27 dim 0 : vector<48x128xf32>, i32 -> vector<48x128xf32>
    %c2_i32_28 = arith.constant 2 : i32
    %58 = tpu.dynamic_rotate %54 by %c2_i32_28 dim 0 : vector<48x128xf32>, i32 -> vector<48x128xf32>
    %c1_i32_29 = arith.constant 1 : i32
    %59 = tpu.dynamic_rotate %54 by %c1_i32_29 dim 0 : vector<48x128xf32>, i32 -> vector<48x128xf32>
    %c47_i32_30 = arith.constant 47 : i32
    %60 = tpu.dynamic_rotate %54 by %c47_i32_30 dim 0 : vector<48x128xf32>, i32 -> vector<48x128xf32>
    %c46_i32_31 = arith.constant 46 : i32
    %61 = tpu.dynamic_rotate %54 by %c46_i32_31 dim 0 : vector<48x128xf32>, i32 -> vector<48x128xf32>
    %c45_i32_32 = arith.constant 45 : i32
    %62 = tpu.dynamic_rotate %54 by %c45_i32_32 dim 0 : vector<48x128xf32>, i32 -> vector<48x128xf32>
    %cst_33 = arith.constant 0.000000e+00 : f32
    %63 = vector.broadcast %cst_33 : f32 to vector<48x128xf32>
    %c0_34 = arith.constant 0 : index
    %c0_35 = arith.constant 0 : index
    %64 = vector.load %arg9[%c0_34, %c0_35] : memref<1024x128xf32, #tpu.memory_space<vmem>>, vector<128x128xf32>
    %cst_36 = arith.constant dense<0.000000e+00> : vector<48x128xf32>
    %65 = tpu.matmul %56, %64, %cst_36 {dimension_numbers = #tpu.dot_dimension_numbers<[1], [0], [0], [1], [0, 0, 1, 1], [], []>} : vector<48x128xf32>, vector<128x128xf32>, vector<48x128xf32> -> vector<48x128xf32>
    %66 = arith.addf %63, %65 : vector<48x128xf32>
    %c128 = arith.constant 128 : index
    %c0_37 = arith.constant 0 : index
    %67 = vector.load %arg9[%c128, %c0_37] : memref<1024x128xf32, #tpu.memory_space<vmem>>, vector<128x128xf32>
    %cst_38 = arith.constant dense<0.000000e+00> : vector<48x128xf32>
    %68 = tpu.matmul %57, %67, %cst_38 {dimension_numbers = #tpu.dot_dimension_numbers<[1], [0], [0], [1], [0, 0, 1, 1], [], []>} : vector<48x128xf32>, vector<128x128xf32>, vector<48x128xf32> -> vector<48x128xf32>
    %69 = arith.addf %66, %68 : vector<48x128xf32>
    %c256 = arith.constant 256 : index
    %c0_39 = arith.constant 0 : index
    %70 = vector.load %arg9[%c256, %c0_39] : memref<1024x128xf32, #tpu.memory_space<vmem>>, vector<128x128xf32>
    %cst_40 = arith.constant dense<0.000000e+00> : vector<48x128xf32>
    %71 = tpu.matmul %58, %70, %cst_40 {dimension_numbers = #tpu.dot_dimension_numbers<[1], [0], [0], [1], [0, 0, 1, 1], [], []>} : vector<48x128xf32>, vector<128x128xf32>, vector<48x128xf32> -> vector<48x128xf32>
    %72 = arith.addf %69, %71 : vector<48x128xf32>
    %c384 = arith.constant 384 : index
    %c0_41 = arith.constant 0 : index
    %73 = vector.load %arg9[%c384, %c0_41] : memref<1024x128xf32, #tpu.memory_space<vmem>>, vector<128x128xf32>
    %cst_42 = arith.constant dense<0.000000e+00> : vector<48x128xf32>
    %74 = tpu.matmul %59, %73, %cst_42 {dimension_numbers = #tpu.dot_dimension_numbers<[1], [0], [0], [1], [0, 0, 1, 1], [], []>} : vector<48x128xf32>, vector<128x128xf32>, vector<48x128xf32> -> vector<48x128xf32>
    %75 = arith.addf %72, %74 : vector<48x128xf32>
    %c512 = arith.constant 512 : index
    %c0_43 = arith.constant 0 : index
    %76 = vector.load %arg9[%c512, %c0_43] : memref<1024x128xf32, #tpu.memory_space<vmem>>, vector<128x128xf32>
    %cst_44 = arith.constant dense<0.000000e+00> : vector<48x128xf32>
    %77 = tpu.matmul %54, %76, %cst_44 {dimension_numbers = #tpu.dot_dimension_numbers<[1], [0], [0], [1], [0, 0, 1, 1], [], []>} : vector<48x128xf32>, vector<128x128xf32>, vector<48x128xf32> -> vector<48x128xf32>
    %78 = arith.addf %75, %77 : vector<48x128xf32>
    %c640 = arith.constant 640 : index
    %c0_45 = arith.constant 0 : index
    %79 = vector.load %arg9[%c640, %c0_45] : memref<1024x128xf32, #tpu.memory_space<vmem>>, vector<128x128xf32>
    %cst_46 = arith.constant dense<0.000000e+00> : vector<48x128xf32>
    %80 = tpu.matmul %60, %79, %cst_46 {dimension_numbers = #tpu.dot_dimension_numbers<[1], [0], [0], [1], [0, 0, 1, 1], [], []>} : vector<48x128xf32>, vector<128x128xf32>, vector<48x128xf32> -> vector<48x128xf32>
    %81 = arith.addf %78, %80 : vector<48x128xf32>
    %c768 = arith.constant 768 : index
    %c0_47 = arith.constant 0 : index
    %82 = vector.load %arg9[%c768, %c0_47] : memref<1024x128xf32, #tpu.memory_space<vmem>>, vector<128x128xf32>
    %cst_48 = arith.constant dense<0.000000e+00> : vector<48x128xf32>
    %83 = tpu.matmul %61, %82, %cst_48 {dimension_numbers = #tpu.dot_dimension_numbers<[1], [0], [0], [1], [0, 0, 1, 1], [], []>} : vector<48x128xf32>, vector<128x128xf32>, vector<48x128xf32> -> vector<48x128xf32>
    %84 = arith.addf %81, %83 : vector<48x128xf32>
    %c896 = arith.constant 896 : index
    %c0_49 = arith.constant 0 : index
    %85 = vector.load %arg9[%c896, %c0_49] : memref<1024x128xf32, #tpu.memory_space<vmem>>, vector<128x128xf32>
    %cst_50 = arith.constant dense<0.000000e+00> : vector<48x128xf32>
    %86 = tpu.matmul %62, %85, %cst_50 {dimension_numbers = #tpu.dot_dimension_numbers<[1], [0], [0], [1], [0, 0, 1, 1], [], []>} : vector<48x128xf32>, vector<128x128xf32>, vector<48x128xf32> -> vector<48x128xf32>
    %87 = arith.addf %84, %86 : vector<48x128xf32>
    %88 = vector.broadcast %55 : vector<1x128xf32> to vector<48x128xf32>
    %89 = arith.addf %87, %88 : vector<48x128xf32>
    %90 = arith.addf %89, %7 : vector<48x128xf32>
    %c0_51 = arith.constant 0 : index
    %c0_52 = arith.constant 0 : index
    %91 = vector.load %arg11[%c0_51, %c0_52] : memref<1x128xf32, #tpu.memory_space<vmem>>, vector<1x128xf32>
    %c0_53 = arith.constant 0 : index
    %c0_54 = arith.constant 0 : index
    %92 = vector.load %arg12[%c0_53, %c0_54] : memref<1x128xf32, #tpu.memory_space<vmem>>, vector<1x128xf32>
    %93 = vector.broadcast %2 : vector<48x1xf32> to vector<48x128xf32>
    %94 = arith.mulf %90, %93 : vector<48x128xf32>
    %cst_55 = arith.constant dense<0.000000e+00> : vector<128xf32>
    %95 = vector.multi_reduction <add>, %94, %cst_55 [0] : vector<48x128xf32> to vector<128xf32>
    %96 = vector.shape_cast %95 : vector<128xf32> to vector<1x128xf32>
    %97 = arith.mulf %94, %94 : vector<48x128xf32>
    %cst_56 = arith.constant dense<0.000000e+00> : vector<128xf32>
    %98 = vector.multi_reduction <add>, %97, %cst_56 [0] : vector<48x128xf32> to vector<128xf32>
    %99 = vector.shape_cast %98 : vector<128xf32> to vector<1x128xf32>
    %cst_57 = arith.constant 3.125000e-02 : f32
    %100 = vector.broadcast %cst_57 : f32 to vector<1x128xf32>
    %101 = arith.mulf %96, %100 : vector<1x128xf32>
    %cst_58 = arith.constant 3.125000e-02 : f32
    %102 = vector.broadcast %cst_58 : f32 to vector<1x128xf32>
    %103 = arith.mulf %99, %102 : vector<1x128xf32>
    %104 = arith.mulf %101, %101 : vector<1x128xf32>
    %105 = arith.subf %103, %104 : vector<1x128xf32>
    %106 = vector.broadcast %101 : vector<1x128xf32> to vector<48x128xf32>
    %107 = arith.subf %90, %106 : vector<48x128xf32>
    %108 = vector.broadcast %91 : vector<1x128xf32> to vector<48x128xf32>
    %109 = arith.mulf %108, %107 : vector<48x128xf32>
    %cst_59 = arith.constant 9.99999974E-6 : f32
    %110 = vector.broadcast %cst_59 : f32 to vector<1x128xf32>
    %111 = arith.addf %105, %110 : vector<1x128xf32>
    %112 = math.rsqrt %111 : vector<1x128xf32>
    %113 = vector.broadcast %112 : vector<1x128xf32> to vector<48x128xf32>
    %114 = arith.mulf %109, %113 : vector<48x128xf32>
    %115 = vector.broadcast %92 : vector<1x128xf32> to vector<48x128xf32>
    %116 = arith.addf %114, %115 : vector<48x128xf32>
    %cst_60 = arith.constant 0.000000e+00 : f32
    %117 = vector.broadcast %cst_60 : f32 to vector<48x128xf32>
    %118 = arith.cmpf ogt, %116, %117 : vector<48x128xf32>
    %119 = math.exp %116 : vector<48x128xf32>
    %cst_61 = arith.constant 1.000000e+00 : f32
    %120 = vector.broadcast %cst_61 : f32 to vector<48x128xf32>
    %121 = arith.subf %119, %120 : vector<48x128xf32>
    %122 = arith.select %118, %116, %121 : vector<48x128xi1>, vector<48x128xf32>
    %c0_62 = arith.constant 0 : index
    %c0_63 = arith.constant 0 : index
    %123 = vector.load %arg13[%c0_62, %c0_63] : memref<48x128xf32, #tpu.memory_space<vmem>>, vector<48x128xf32>
    tpu.vector_store %arg13[%c0_62, %c0_63], %122 {strides = array<i32>} : memref<48x128xf32, #tpu.memory_space<vmem>>, vector<48x128xf32>,
    return
  }
}

</mosaic_0001>

<llo_original>
// kernel: tpu_custom_call.1
$region0: #{tpu_custom_call.1}
  #allocation0 [shape = 'u32[]', space=smem, size = 0x4, offset = 0x4, fixed_abs, tag = 'smem constant byte address 0x4 - core index']
  #allocation1 [shape = 'u32[144,128]{1,0:T(1,128)}', space=vmem, size = 0x12000, scoped, tag = 'internal scratch']
  %s0 = inlined_call_operand.vmem [shape: f32[48,4], index: 0, kind: input, shape index: {}]
  %s1 = inlined_call_operand.vmem [shape: f32[48,1], index: 1, kind: input, shape index: {}]
  %s2 = inlined_call_operand.vmem [shape: f32[48,1], index: 2, kind: input, shape index: {}]
  %s3 = inlined_call_operand.vmem [shape: f32[4,128], index: 3, kind: input, shape index: {}]
  %s4 = inlined_call_operand.vmem [shape: f32[1,128], index: 4, kind: input, shape index: {}]
  %s5 = inlined_call_operand.vmem [shape: f32[32,128], index: 5, kind: input, shape index: {}]
  %s6 = inlined_call_operand.vmem [shape: f32[1,128], index: 6, kind: input, shape index: {}]
  %s7 = inlined_call_operand.vmem [shape: f32[1,128], index: 7, kind: input, shape index: {}]
  %s8 = inlined_call_operand.vmem [shape: f32[1,128], index: 8, kind: input, shape index: {}]
  %s9 = inlined_call_operand.hbm [shape: f32[1024,128], index: 9, kind: input, shape index: {}]
  %s10 = inlined_call_operand.vmem [shape: f32[1,128], index: 10, kind: input, shape index: {}]
  %s11 = inlined_call_operand.vmem [shape: f32[1,128], index: 11, kind: input, shape index: {}]
  %s12 = inlined_call_operand.vmem [shape: f32[1,128], index: 12, kind: input, shape index: {}]
  %s13 = inlined_call_operand.hbm [shape: f32[48,128], index: 13, kind: output, shape index: {}]
  %s14 = sld [smem:[#allocation0]]
  $region66: #{tpu_custom_call.1} parent=0
    _
  %s16 = ssub.s32 1, %s14
  %s17 = scalar_select 0, %s16, %s14
  $region1: #{tpu_custom_call.1} parent=0
    #allocation2 [shape = 'u8[524288]{0}', space=vmem, size = 0x80000, scoped, tag = 'input window, operand 9, single buffered']
    #allocation3 [shape = 's32[1]{0}', space=sflag, size = 0x4, scoped, tag = 'scoped memory for tpu_custom_call.1']
    #allocation4 [shape = 's32[1]{0}', space=sflag, size = 0x4, scoped, tag = 'scoped memory for tpu_custom_call.1']
    #allocation5 [shape = 'u8[24576]{0}', space=vmem, size = 0x6000, scoped, tag = 'output window, operand 0, single buffered']
    %18 = vsyncpa [#allocation3], 0
    %19 = vsyncpa [#allocation4], 0
    // Predicated region
    $region2: #{tpu_custom_call.1} parent=1 // pred_check
      _
    $region3: #{tpu_custom_call.1} parent=1 // pred_check_branch
      %21 = sbr.rel (0) target = $region5
    $region4: #{tpu_custom_call.1} parent=1 // pred_region
      _
    $region5: #{tpu_custom_call.1} parent=1 // pred_fallthru
      _
    // Predicated region
    $region6: #{tpu_custom_call.1} parent=1 // pred_check
      _
    $region7: #{tpu_custom_call.1} parent=1 // pred_check_branch
      %23 = sbr.rel (0) target = $region9
    $region8: #{tpu_custom_call.1} parent=1 // pred_region
      _
    $region9: #{tpu_custom_call.1} parent=1 // pred_fallthru
      _
    // Predicated region
    $region10: #{tpu_custom_call.1} parent=1 // pred_check
      _
    $region11: #{tpu_custom_call.1} parent=1 // pred_check_branch
      %25 = sbr.rel (0) target = $region13
    $region12: #{tpu_custom_call.1} parent=1 // pred_region
      _
    $region13: #{tpu_custom_call.1} parent=1 // pred_fallthru
      _
    // Predicated region
    $region14: #{tpu_custom_call.1} parent=1 // pred_check
      _
    $region15: #{tpu_custom_call.1} parent=1 // pred_check_branch
      %27 = sbr.rel (0) target = $region17
    $region16: #{tpu_custom_call.1} parent=1 // pred_region
      _
    $region17: #{tpu_custom_call.1} parent=1 // pred_fallthru
      _
    // Predicated region
    $region18: #{tpu_custom_call.1} parent=1 // pred_check
      _
    $region19: #{tpu_custom_call.1} parent=1 // pred_check_branch
      %29 = sbr.rel (0) target = $region21
    $region20: #{tpu_custom_call.1} parent=1 // pred_region
      _
    $region21: #{tpu_custom_call.1} parent=1 // pred_fallthru
      _
    // Predicated region
    $region22: #{tpu_custom_call.1} parent=1 // pred_check
      _
    $region23: #{tpu_custom_call.1} parent=1 // pred_check_branch
      %31 = sbr.rel (0) target = $region25
    $region24: #{tpu_custom_call.1} parent=1 // pred_region
      _
    $region25: #{tpu_custom_call.1} parent=1 // pred_fallthru
      _
    // Predicated region
    $region26: #{tpu_custom_call.1} parent=1 // pred_check
      _
    $region27: #{tpu_custom_call.1} parent=1 // pred_check_branch
      %33 = sbr.rel (0) target = $region29
    $region28: #{tpu_custom_call.1} parent=1 // pred_region
      _
    $region29: #{tpu_custom_call.1} parent=1 // pred_fallthru
      _
    // Predicated region
    $region30: #{tpu_custom_call.1} parent=1 // pred_check
      _
    $region31: #{tpu_custom_call.1} parent=1 // pred_check_branch
      %35 = sbr.rel (0) target = $region33
    $region32: #{tpu_custom_call.1} parent=1 // pred_region
      _
    $region33: #{tpu_custom_call.1} parent=1 // pred_fallthru
      _
    // Predicated region
    $region34: #{tpu_custom_call.1} parent=1 // pred_check
      _
    $region35: #{tpu_custom_call.1} parent=1 // pred_check_branch
      %37 = sbr.rel (0) target = $region37
    $region36: #{tpu_custom_call.1} parent=1 // pred_region
      _
    $region37: #{tpu_custom_call.1} parent=1 // pred_fallthru
      _
    // Predicated region
    $region38: #{tpu_custom_call.1} parent=1 // pred_check
      _
    $region39: #{tpu_custom_call.1} parent=1 // pred_check_branch
      %39 = sbr.rel (0) target = $region41
    $region40: #{tpu_custom_call.1} parent=1 // pred_region
      %s41 = ssub.s32 16384, 16384
      %42 = vsyncadd [#allocation3], %s41
      %s43 = sshll.u32 [#allocation2], 4
      %s44 = int_to_ptr.vmem [resolvable:$true] %s43
      %49 = dma.hbm_to_vmem [thread:$0]  %s9, 16384, %s44, [#allocation3], 128, 128, 8
    $region41: #{tpu_custom_call.1} parent=1 // pred_fallthru
      _
    // Predicated region
    $region42: #{tpu_custom_call.1} parent=1 // pred_check
      _
    $region43: #{tpu_custom_call.1} parent=1 // pred_check_branch
      %51 = sbr.rel (0) target = $region45
    $region44: #{tpu_custom_call.1} parent=1 // pred_region
      _
    $region45: #{tpu_custom_call.1} parent=1 // pred_fallthru
      _
    // Predicated region
    $region46: #{tpu_custom_call.1} parent=1 // pred_check
      _
    $region47: #{tpu_custom_call.1} parent=1 // pred_check_branch
      %53 = sbr.rel (0) target = $region49
    $region48: #{tpu_custom_call.1} parent=1 // pred_region
      _
    $region49: #{tpu_custom_call.1} parent=1 // pred_fallthru
      _
    // Predicated region
    $region50: #{tpu_custom_call.1} parent=1 // pred_check
      _
    $region51: #{tpu_custom_call.1} parent=1 // pred_check_branch
      %55 = sbr.rel (0) target = $region53
    $region52: #{tpu_custom_call.1} parent=1 // pred_region
      _
    $region53: #{tpu_custom_call.1} parent=1 // pred_fallthru
      _
    // Predicated region
    $region54: #{tpu_custom_call.1} parent=1 // pred_check
      _
    $region55: #{tpu_custom_call.1} parent=1 // pred_check_branch
      %57 = sbr.rel (0) target = $region57
    $region56: #{tpu_custom_call.1} parent=1 // pred_region
      %58 = dma.done [#allocation3], 16384
    $region57: #{tpu_custom_call.1} parent=1 // pred_fallthru
      _
    %v59 = vld [vmem:[%s0] sm:$0xff]
    %v60 = vld [vmem:[%s0 + $0x8] sm:$0xff]
    %v61 = vld [vmem:[%s0 + $0x10] sm:$0xff]
    %v62 = vld [vmem:[%s0 + $0x18] sm:$0xff]
    %v63 = vld [vmem:[%s0 + $0x20] sm:$0xff]
    %v64 = vld [vmem:[%s0 + $0x28] sm:$0xff]
    %v65 = vld [vmem:[%s1] sm:$0xff]
    %v66 = vld [vmem:[%s1 + $0x8] sm:$0xff]
    %v67 = vld [vmem:[%s1 + $0x10] sm:$0xff]
    %v68 = vld [vmem:[%s1 + $0x18] sm:$0xff]
    %v69 = vld [vmem:[%s1 + $0x20] sm:$0xff]
    %v70 = vld [vmem:[%s1 + $0x28] sm:$0xff]
    %v71 = vld [vmem:[%s2] sm:$0xff]
    %v72 = vld [vmem:[%s2 + $0x8] sm:$0xff]
    %v73 = vld [vmem:[%s2 + $0x10] sm:$0xff]
    %v74 = vld [vmem:[%s2 + $0x18] sm:$0xff]
    %v75 = vld [vmem:[%s2 + $0x20] sm:$0xff]
    %v76 = vld [vmem:[%s2 + $0x28] sm:$0xff]
    %v77 = vld [vmem:[%s3] sm:$0xf]
    %v78 = vld [vmem:[%s4] sm:$0x1]
    %v80 = vlaneseq
    %v81 = vshrl.u32 %v80, 7
    %v82 = vsub.s32 0, %v81
    %v83 = vrot.slane %v78, %v82
    %vm85 = vcmask 31744
    %v87 = vsel %vm85, %v59, 0
    %v90 = vsel %vm85, %v60, 0
    %v93 = vsel %vm85, %v61, 0
    %v96 = vsel %vm85, %v62, 0
    %v99 = vsel %vm85, %v63, 0
    %v102 = vsel %vm85, %v64, 0
    %vm104 = vcmask 1043456
    %v106 = vsel %vm104, %v77, 0
    %108 = vmatprep.subr.mxu0 0.0
    %109 = vmatpush1.msra.mxu0 %v106
    %110 = vmatprep.subr.mxu0 0.0
    %111 = vmatpush1.msra.mxu0 0.0
    %112 = vmatprep.subr.mxu0 0.0
    %113 = vmatpush1.msra.mxu0 0.0
    %114 = vmatprep.subr.mxu0 0.0
    %115 = vmatpush1.msra.mxu0 0.0
    %116 = vmatprep.subr.mxu0 0.0
    %117 = vmatpush1.msra.mxu0 0.0
    %118 = vmatprep.subr.mxu0 0.0
    %119 = vmatpush1.msra.mxu0 0.0
    %120 = vmatprep.subr.mxu0 0.0
    %121 = vmatpush1.msra.mxu0 0.0
    %122 = vmatprep.subr.mxu0 0.0
    %123 = vmatpush1.msra.mxu0 0.0
    %124 = vmatprep.subr.mxu0 0.0
    %125 = vmatpush1.msra.mxu0 0.0
    %126 = vmatprep.subr.mxu0 0.0
    %127 = vmatpush1.msra.mxu0 0.0
    %128 = vmatprep.subr.mxu0 0.0
    %129 = vmatpush1.msra.mxu0 0.0
    %130 = vmatprep.subr.mxu0 0.0
    %131 = vmatpush1.msra.mxu0 0.0
    %132 = vmatprep.subr.mxu0 0.0
    %133 = vmatpush1.msra.mxu0 0.0
    %134 = vmatprep.subr.mxu0 0.0
    %135 = vmatpush1.msra.mxu0 0.0
    %136 = vmatprep.subr.mxu0 0.0
    %137 = vmatpush1.msra.mxu0 0.0
    %138 = vmatprep.subr.mxu0 0.0
    %139 = vmatpush1.msra.mxu0 0.0
    %140 = vmatprep.subr.mxu0 0.0
    %141 = vmatpush1.msra.mxu0 0.0
    %142 = vmatprep.subr.mxu0 0.0
    %143 = vmatpush1.msra.mxu0 0.0
    %144 = vmatprep.subr.mxu0 0.0
    %145 = vmatpush1.msra.mxu0 0.0
    %146 = vmatprep.subr.mxu0 0.0
    %147 = vmatpush1.msra.mxu0 0.0
    %148 = vmatprep.subr.mxu0 0.0
    %149 = vmatpush1.msra.mxu0 0.0
    %150 = vmatprep.subr.mxu0 0.0
    %151 = vmatpush1.msra.mxu0 0.0
    %152 = vmatprep.subr.mxu0 0.0
    %153 = vmatpush1.msra.mxu0 0.0
    %154 = vmatprep.subr.mxu0 0.0
    %155 = vmatpush1.msra.mxu0 0.0
    %156 = vmatprep.subr.mxu0 0.0
    %157 = vmatpush1.msra.mxu0 0.0
    %158 = vmatprep.subr.mxu0 0.0
    %159 = vmatpush1.msra.mxu0 0.0
    %160 = vmatprep.subr.mxu0 0.0
    %161 = vmatpush1.msra.mxu0 0.0
    %162 = vmatprep.subr.mxu0 0.0
    %163 = vmatpush1.msra.mxu0 0.0
    %164 = vmatprep.subr.mxu0 0.0
    %165 = vmatpush1.msra.mxu0 0.0
    %166 = vmatprep.subr.mxu0 0.0
    %167 = vmatpush1.msra.mxu0 0.0
    %168 = vmatprep.subr.mxu0 0.0
    %169 = vmatpush1.msra.mxu0 0.0
    %170 = vmatprep.subr.mxu0 0.0
    %171 = vmatpush1.msra.mxu0 0.0
    %172 = vmatprep.mubr.f32.mxu0 0.0
    %173 = vmatmul.mubr.f32.gmra.mrb[0].mxu0 %v87
    %v174 = vpop.f32.mrb[0].mxu0
    %v175 = vadd.f32 %v83, %v174
    %v176 = vpop.f32.mrb[0].mxu0
    %177 = vmatprep.mubr.f32.mxu0 0.0
    %178 = vmatmul.mubr.f32.gmra.mrb[0].mxu0 %v90
    %v179 = vpop.f32.mrb[0].mxu0
    %v180 = vadd.f32 %v83, %v179
    %v181 = vpop.f32.mrb[0].mxu0
    %182 = vmatprep.mubr.f32.mxu0 0.0
    %183 = vmatmul.mubr.f32.gmra.mrb[0].mxu0 %v93
    %v184 = vpop.f32.mrb[0].mxu0
    %v185 = vadd.f32 %v83, %v184
    %v186 = vpop.f32.mrb[0].mxu0
    %187 = vmatprep.mubr.f32.mxu0 0.0
    %188 = vmatmul.mubr.f32.gmra.mrb[0].mxu0 %v96
    %v189 = vpop.f32.mrb[0].mxu0
    %v190 = vadd.f32 %v83, %v189
    %v191 = vpop.f32.mrb[0].mxu0
    %192 = vmatprep.mubr.f32.mxu0 0.0
    %193 = vmatmul.mubr.f32.gmra.mrb[0].mxu0 %v99
    %v194 = vpop.f32.mrb[0].mxu0
    %v195 = vadd.f32 %v83, %v194
    %v196 = vpop.f32.mrb[0].mxu0
    %197 = vmatprep.mubr.f32.mxu0 0.0
    %198 = vmatmul.mubr.f32.gmra.mrb[0].mxu0 %v102
    %v199 = vpop.f32.mrb[0].mxu0
    %v200 = vadd.f32 %v83, %v199
    %v201 = vpop.f32.mrb[0].mxu0
    %202 = vdwg.mxu0
    %v203 = vld [vmem:[%s6] sm:$0x1]
    %v204 = vrot.slane %v59, 5
    %v205 = vrot.slane %v60, 5
    %v206 = vrot.slane %v61, 5
    %v207 = vrot.slane %v62, 5
    %v208 = vrot.slane %v63, 5
    %v209 = vrot.slane %v64, 5
    %v210 = vlaneseq
    %v211 = vshrl.u32 %v210, 7
    %vm212 = vcmp.lt.s32.totalorder %v211, 3
    %v213 = vsel %vm212, %v208, %v209
    %v214 = vsel %vm212, %v207, %v208
    %v215 = vsel %vm212, %v206, %v207
    %v216 = vsel %vm212, %v205, %v206
    %v217 = vsel %vm212, %v204, %v205
    %v218 = vsel %vm212, %v209, %v204
    %v219 = vrot.slane %v59, 6
    %v220 = vrot.slane %v60, 6
    %v221 = vrot.slane %v61, 6
    %v222 = vrot.slane %v62, 6
    %v223 = vrot.slane %v63, 6
    %v224 = vrot.slane %v64, 6
    %vm225 = vcmp.lt.s32.totalorder %v211, 2
    %v226 = vsel %vm225, %v223, %v224
    %v227 = vsel %vm225, %v222, %v223
    %v228 = vsel %vm225, %v221, %v222
    %v229 = vsel %vm225, %v220, %v221
    %v230 = vsel %vm225, %v219, %v220
    %v231 = vsel %vm225, %v224, %v219
    %v232 = vrot.slane %v59, 7
    %v233 = vrot.slane %v60, 7
    %v234 = vrot.slane %v61, 7
    %v235 = vrot.slane %v62, 7
    %v236 = vrot.slane %v63, 7
    %v237 = vrot.slane %v64, 7
    %vm238 = vcmp.lt.s32.totalorder %v211, 1
    %v239 = vsel %vm238, %v236, %v237
    %v240 = vsel %vm238, %v235, %v236
    %v241 = vsel %vm238, %v234, %v235
    %v242 = vsel %vm238, %v233, %v234
    %v243 = vsel %vm238, %v232, %v233
    %v244 = vsel %vm238, %v237, %v232
    %v245 = vrot.slane %v59, 1
    %v246 = vrot.slane %v60, 1
    %v247 = vrot.slane %v61, 1
    %v248 = vrot.slane %v62, 1
    %v249 = vrot.slane %v63, 1
    %v250 = vrot.slane %v64, 1
    %vm251 = vcmp.lt.s32.totalorder %v211, 7
    %v252 = vsel %vm251, %v249, %v250
    %v253 = vsel %vm251, %v248, %v249
    %v254 = vsel %vm251, %v247, %v248
    %v255 = vsel %vm251, %v246, %v247
    %v256 = vsel %vm251, %v245, %v246
    %v257 = vsel %vm251, %v250, %v245
    %v258 = vrot.slane %v59, 2
    %v259 = vrot.slane %v60, 2
    %v260 = vrot.slane %v61, 2
    %v261 = vrot.slane %v62, 2
    %v262 = vrot.slane %v63, 2
    %v263 = vrot.slane %v64, 2
    %vm264 = vcmp.lt.s32.totalorder %v211, 6
    %v265 = vsel %vm264, %v262, %v263
    %v266 = vsel %vm264, %v261, %v262
    %v267 = vsel %vm264, %v260, %v261
    %v268 = vsel %vm264, %v259, %v260
    %v269 = vsel %vm264, %v258, %v259
    %v270 = vsel %vm264, %v263, %v258
    %v271 = vrot.slane %v59, 3
    %v272 = vrot.slane %v60, 3
    %v273 = vrot.slane %v61, 3
    %v274 = vrot.slane %v62, 3
    %v275 = vrot.slane %v63, 3
    %v276 = vrot.slane %v64, 3
    %vm277 = vcmp.lt.s32.totalorder %v211, 5
    %v278 = vsel %vm277, %v275, %v276
    %v279 = vsel %vm277, %v274, %v275
    %v280 = vsel %vm277, %v273, %v274
    %v281 = vsel %vm277, %v272, %v273
    %v282 = vsel %vm277, %v271, %v272
    %v283 = vsel %vm277, %v276, %v271
    %v284 = vrot.slane %v59, 4
    %v285 = vrot.slane %v60, 4
    %v286 = vrot.slane %v61, 4
    %v287 = vrot.slane %v62, 4
    %v288 = vrot.slane %v63, 4
    %v289 = vrot.slane %v64, 4
    %vm290 = vcmp.lt.s32.totalorder %v211, 4
    %v291 = vsel %vm290, %v288, %v289
    %v292 = vsel %vm290, %v287, %v288
    %v293 = vsel %vm290, %v286, %v287
    %v294 = vsel %vm290, %v285, %v286
    %v295 = vsel %vm290, %v284, %v285
    %v296 = vsel %vm290, %v289, %v284
    %303 = vrot.lane.b32.xlu0 %v231, 4
    %v304 = vpop.permute.xlu0 %303
    %305 = vrot.lane.b32.xlu0 %v230, 4
    %v306 = vpop.permute.xlu0 %305
    %307 = vrot.lane.b32.xlu0 %v229, 4
    %v308 = vpop.permute.xlu0 %307
    %309 = vrot.lane.b32.xlu0 %v228, 4
    %v310 = vpop.permute.xlu0 %309
    %311 = vrot.lane.b32.xlu0 %v227, 4
    %v312 = vpop.permute.xlu0 %311
    %313 = vrot.lane.b32.xlu0 %v226, 4
    %v314 = vpop.permute.xlu0 %313
    %327 = vrot.lane.b32.xlu0 %v244, 8
    %v328 = vpop.permute.xlu0 %327
    %329 = vrot.lane.b32.xlu0 %v243, 8
    %v330 = vpop.permute.xlu0 %329
    %331 = vrot.lane.b32.xlu0 %v242, 8
    %v332 = vpop.permute.xlu0 %331
    %333 = vrot.lane.b32.xlu0 %v241, 8
    %v334 = vpop.permute.xlu0 %333
    %335 = vrot.lane.b32.xlu0 %v240, 8
    %v336 = vpop.permute.xlu0 %335
    %337 = vrot.lane.b32.xlu0 %v239, 8
    %v338 = vpop.permute.xlu0 %337
    %345 = vrot.lane.b32.xlu0 %v59, 12
    %v346 = vpop.permute.xlu0 %345
    %347 = vrot.lane.b32.xlu0 %v60, 12
    %v348 = vpop.permute.xlu0 %347
    %349 = vrot.lane.b32.xlu0 %v61, 12
    %v350 = vpop.permute.xlu0 %349
    %351 = vrot.lane.b32.xlu0 %v62, 12
    %v352 = vpop.permute.xlu0 %351
    %353 = vrot.lane.b32.xlu0 %v63, 12
    %v354 = vpop.permute.xlu0 %353
    %355 = vrot.lane.b32.xlu0 %v64, 12
    %v356 = vpop.permute.xlu0 %355
    %369 = vrot.lane.b32.xlu0 %v256, 16
    %v370 = vpop.permute.xlu0 %369
    %371 = vrot.lane.b32.xlu0 %v255, 16
    %v372 = vpop.permute.xlu0 %371
    %373 = vrot.lane.b32.xlu0 %v254, 16
    %v374 = vpop.permute.xlu0 %373
    %375 = vrot.lane.b32.xlu0 %v253, 16
    %v376 = vpop.permute.xlu0 %375
    %377 = vrot.lane.b32.xlu0 %v252, 16
    %v378 = vpop.permute.xlu0 %377
    %379 = vrot.lane.b32.xlu0 %v257, 16
    %v380 = vpop.permute.xlu0 %379
    %393 = vrot.lane.b32.xlu0 %v269, 20
    %v394 = vpop.permute.xlu0 %393
    %395 = vrot.lane.b32.xlu0 %v268, 20
    %v396 = vpop.permute.xlu0 %395
    %397 = vrot.lane.b32.xlu0 %v267, 20
    %v398 = vpop.permute.xlu0 %397
    %399 = vrot.lane.b32.xlu0 %v266, 20
    %v400 = vpop.permute.xlu0 %399
    %401 = vrot.lane.b32.xlu0 %v265, 20
    %v402 = vpop.permute.xlu0 %401
    %403 = vrot.lane.b32.xlu0 %v270, 20
    %v404 = vpop.permute.xlu0 %403
    %417 = vrot.lane.b32.xlu0 %v282, 24
    %v418 = vpop.permute.xlu0 %417
    %419 = vrot.lane.b32.xlu0 %v281, 24
    %v420 = vpop.permute.xlu0 %419
    %421 = vrot.lane.b32.xlu0 %v280, 24
    %v422 = vpop.permute.xlu0 %421
    %423 = vrot.lane.b32.xlu0 %v279, 24
    %v424 = vpop.permute.xlu0 %423
    %425 = vrot.lane.b32.xlu0 %v278, 24
    %v426 = vpop.permute.xlu0 %425
    %427 = vrot.lane.b32.xlu0 %v283, 24
    %v428 = vpop.permute.xlu0 %427
    %441 = vrot.lane.b32.xlu0 %v295, 28
    %v442 = vpop.permute.xlu0 %441
    %443 = vrot.lane.b32.xlu0 %v294, 28
    %v444 = vpop.permute.xlu0 %443
    %445 = vrot.lane.b32.xlu0 %v293, 28
    %v446 = vpop.permute.xlu0 %445
    %447 = vrot.lane.b32.xlu0 %v292, 28
    %v448 = vpop.permute.xlu0 %447
    %449 = vrot.lane.b32.xlu0 %v291, 28
    %v450 = vpop.permute.xlu0 %449
    %451 = vrot.lane.b32.xlu0 %v296, 28
    %v452 = vpop.permute.xlu0 %451
    %v459 = vsel %vm85, %v218, %v304
    %v460 = vsel %vm85, %v217, %v306
    %v461 = vsel %vm85, %v216, %v308
    %v462 = vsel %vm85, %v215, %v310
    %v463 = vsel %vm85, %v214, %v312
    %v464 = vsel %vm85, %v213, %v314
    %vm465 = vcmask 64512
    %v466 = vsel %vm465, %v459, %v328
    %v467 = vsel %vm465, %v460, %v330
    %v468 = vsel %vm465, %v461, %v332
    %v469 = vsel %vm465, %v462, %v334
    %v470 = vsel %vm465, %v463, %v336
    %v471 = vsel %vm465, %v464, %v338
    %vm472 = vcmask 97280
    %v473 = vsel %vm472, %v466, %v346
    %v474 = vsel %vm472, %v467, %v348
    %v475 = vsel %vm472, %v468, %v350
    %v476 = vsel %vm472, %v469, %v352
    %v477 = vsel %vm472, %v470, %v354
    %v478 = vsel %vm472, %v471, %v356
    %vm479 = vcmask 130048
    %v480 = vsel %vm479, %v473, %v370
    %v481 = vsel %vm479, %v474, %v372
    %v482 = vsel %vm479, %v475, %v374
    %v483 = vsel %vm479, %v476, %v376
    %v484 = vsel %vm479, %v477, %v378
    %v485 = vsel %vm479, %v478, %v380
    %vm486 = vcmask 162816
    %v487 = vsel %vm486, %v480, %v394
    %v488 = vsel %vm486, %v481, %v396
    %v489 = vsel %vm486, %v482, %v398
    %v490 = vsel %vm486, %v483, %v400
    %v491 = vsel %vm486, %v484, %v402
    %v492 = vsel %vm486, %v485, %v404
    %vm493 = vcmask 195584
    %v494 = vsel %vm493, %v487, %v418
    %v495 = vsel %vm493, %v488, %v420
    %v496 = vsel %vm493, %v489, %v422
    %v497 = vsel %vm493, %v490, %v424
    %v498 = vsel %vm493, %v491, %v426
    %v499 = vsel %vm493, %v492, %v428
    %vm500 = vcmask 228352
    %v501 = vsel %vm500, %v494, %v442
    %v502 = vsel %vm500, %v495, %v444
    %v503 = vsel %vm500, %v496, %v446
    %v504 = vsel %vm500, %v497, %v448
    %v505 = vsel %vm500, %v498, %v450
    %v506 = vsel %vm500, %v499, %v452
    %v507 = vld [vmem:[%s5] sm:$0xff]
    %v508 = vld [vmem:[%s5 + $0x8] sm:$0xff]
    %v509 = vld [vmem:[%s5 + $0x10] sm:$0xff]
    %v510 = vld [vmem:[%s5 + $0x18] sm:$0xff]
    %v512 = vlaneseq
    %v513 = vshrl.u32 %v512, 7
    %v514 = vsub.s32 0, %v513
    %v515 = vrot.slane %v203, %v514
    %vm517 = vcmask 261120
    %v519 = vsel %vm517, %v501, 0
    %v522 = vsel %vm517, %v502, 0
    %v525 = vsel %vm517, %v503, 0
    %v528 = vsel %vm517, %v504, 0
    %v531 = vsel %vm517, %v505, 0
    %v534 = vsel %vm517, %v506, 0
    %536 = vmatprep.subr.mxu0 0.0
    %537 = vmatpush1.msra.mxu0 %v507
    %538 = vmatprep.subr.mxu0 0.0
    %539 = vmatpush1.msra.mxu0 %v508
    %540 = vmatprep.subr.mxu0 0.0
    %541 = vmatpush1.msra.mxu0 %v509
    %542 = vmatprep.subr.mxu0 0.0
    %543 = vmatpush1.msra.mxu0 %v510
    %544 = vmatprep.subr.mxu0 0.0
    %545 = vmatpush1.msra.mxu0 0.0
    %546 = vmatprep.subr.mxu0 0.0
    %547 = vmatpush1.msra.mxu0 0.0
    %548 = vmatprep.subr.mxu0 0.0
    %549 = vmatpush1.msra.mxu0 0.0
    %550 = vmatprep.subr.mxu0 0.0
    %551 = vmatpush1.msra.mxu0 0.0
    %552 = vmatprep.subr.mxu0 0.0
    %553 = vmatpush1.msra.mxu0 0.0
    %554 = vmatprep.subr.mxu0 0.0
    %555 = vmatpush1.msra.mxu0 0.0
    %556 = vmatprep.subr.mxu0 0.0
    %557 = vmatpush1.msra.mxu0 0.0
    %558 = vmatprep.subr.mxu0 0.0
    %559 = vmatpush1.msra.mxu0 0.0
    %560 = vmatprep.subr.mxu0 0.0
    %561 = vmatpush1.msra.mxu0 0.0
    %562 = vmatprep.subr.mxu0 0.0
    %563 = vmatpush1.msra.mxu0 0.0
    %564 = vmatprep.subr.mxu0 0.0
    %565 = vmatpush1.msra.mxu0 0.0
    %566 = vmatprep.subr.mxu0 0.0
    %567 = vmatpush1.msra.mxu0 0.0
    %568 = vmatprep.subr.mxu0 0.0
    %569 = vmatpush1.msra.mxu0 0.0
    %570 = vmatprep.subr.mxu0 0.0
    %571 = vmatpush1.msra.mxu0 0.0
    %572 = vmatprep.subr.mxu0 0.0
    %573 = vmatpush1.msra.mxu0 0.0
    %574 = vmatprep.subr.mxu0 0.0
    %575 = vmatpush1.msra.mxu0 0.0
    %576 = vmatprep.subr.mxu0 0.0
    %577 = vmatpush1.msra.mxu0 0.0
    %578 = vmatprep.subr.mxu0 0.0
    %579 = vmatpush1.msra.mxu0 0.0
    %580 = vmatprep.subr.mxu0 0.0
    %581 = vmatpush1.msra.mxu0 0.0
    %582 = vmatprep.subr.mxu0 0.0
    %583 = vmatpush1.msra.mxu0 0.0
    %584 = vmatprep.subr.mxu0 0.0
    %585 = vmatpush1.msra.mxu0 0.0
    %586 = vmatprep.subr.mxu0 0.0
    %587 = vmatpush1.msra.mxu0 0.0
    %588 = vmatprep.subr.mxu0 0.0
    %589 = vmatpush1.msra.mxu0 0.0
    %590 = vmatprep.subr.mxu0 0.0
    %591 = vmatpush1.msra.mxu0 0.0
    %592 = vmatprep.subr.mxu0 0.0
    %593 = vmatpush1.msra.mxu0 0.0
    %594 = vmatprep.subr.mxu0 0.0
    %595 = vmatpush1.msra.mxu0 0.0
    %596 = vmatprep.subr.mxu0 0.0
    %597 = vmatpush1.msra.mxu0 0.0
    %598 = vmatprep.subr.mxu0 0.0
    %599 = vmatpush1.msra.mxu0 0.0
    %600 = vmatprep.mubr.f32.mxu0 0.0
    %601 = vmatmul.mubr.f32.gmra.mrb[0].mxu0 %v519
    %v602 = vpop.f32.mrb[0].mxu0
    %v603 = vadd.f32 %v515, %v602
    %v604 = vpop.f32.mrb[0].mxu0
    %605 = vmatprep.mubr.f32.mxu0 0.0
    %606 = vmatmul.mubr.f32.gmra.mrb[0].mxu0 %v522
    %v607 = vpop.f32.mrb[0].mxu0
    %v608 = vadd.f32 %v515, %v607
    %v609 = vpop.f32.mrb[0].mxu0
    %610 = vmatprep.mubr.f32.mxu0 0.0
    %611 = vmatmul.mubr.f32.gmra.mrb[0].mxu0 %v525
    %v612 = vpop.f32.mrb[0].mxu0
    %v613 = vadd.f32 %v515, %v612
    %v614 = vpop.f32.mrb[0].mxu0
    %615 = vmatprep.mubr.f32.mxu0 0.0
    %616 = vmatmul.mubr.f32.gmra.mrb[0].mxu0 %v528
    %v617 = vpop.f32.mrb[0].mxu0
    %v618 = vadd.f32 %v515, %v617
    %v619 = vpop.f32.mrb[0].mxu0
    %620 = vmatprep.mubr.f32.mxu0 0.0
    %621 = vmatmul.mubr.f32.gmra.mrb[0].mxu0 %v531
    %v622 = vpop.f32.mrb[0].mxu0
    %v623 = vadd.f32 %v515, %v622
    %v624 = vpop.f32.mrb[0].mxu0
    %625 = vmatprep.mubr.f32.mxu0 0.0
    %626 = vmatmul.mubr.f32.gmra.mrb[0].mxu0 %v534
    %v627 = vpop.f32.mrb[0].mxu0
    %v628 = vadd.f32 %v515, %v627
    %v629 = vpop.f32.mrb[0].mxu0
    %630 = vdwg.mxu0
    %v631 = vld [vmem:[%s7] sm:$0x1]
    %v632 = vld [vmem:[%s8] sm:$0x1]
    %634 = vset.pattern.permute.xlu0 0
    %635 = vperm.xlu0 %634, %v65
    %v636 = vpop.permute.xlu0 %635
    %639 = vset.pattern.permute.xlu0 0
    %640 = vperm.xlu0 %639, %v66
    %v641 = vpop.permute.xlu0 %640
    %644 = vset.pattern.permute.xlu0 0
    %645 = vperm.xlu0 %644, %v67
    %v646 = vpop.permute.xlu0 %645
    %649 = vset.pattern.permute.xlu0 0
    %650 = vperm.xlu0 %649, %v68
    %v651 = vpop.permute.xlu0 %650
    %654 = vset.pattern.permute.xlu0 0
    %655 = vperm.xlu0 %654, %v69
    %v656 = vpop.permute.xlu0 %655
    %659 = vset.pattern.permute.xlu0 0
    %660 = vperm.xlu0 %659, %v70
    %v661 = vpop.permute.xlu0 %660
    %v663 = vmul.f32 %v603, %v636
    %v664 = vmul.f32 %v608, %v641
    %v665 = vmul.f32 %v613, %v646
    %v666 = vmul.f32 %v618, %v651
    %v667 = vmul.f32 %v623, %v656
    %v668 = vmul.f32 %v628, %v661
    %v669 = vadd.f32 %v663, %v664
    %v670 = vadd.f32 %v669, %v665
    %v671 = vadd.f32 %v670, %v666
    %v672 = vadd.f32 %v671, %v667
    %v673 = vadd.f32 %v672, %v668
    %v674 = vrot.slane %v673, 4
    %v675 = vadd.f32 %v673, %v674
    %v676 = vrot.slane %v675, 2
    %v677 = vadd.f32 %v675, %v676
    %v678 = vrot.slane %v677, 1
    %v679 = vadd.f32 %v677, %v678
    %v680 = vmul.f32 %v663, %v663
    %v681 = vmul.f32 %v664, %v664
    %v682 = vmul.f32 %v665, %v665
    %v683 = vmul.f32 %v666, %v666
    %v684 = vmul.f32 %v667, %v667
    %v685 = vmul.f32 %v668, %v668
    %v686 = vadd.f32 %v680, %v681
    %v687 = vadd.f32 %v686, %v682
    %v688 = vadd.f32 %v687, %v683
    %v689 = vadd.f32 %v688, %v684
    %v690 = vadd.f32 %v689, %v685
    %v691 = vrot.slane %v690, 4
    %v692 = vadd.f32 %v690, %v691
    %v693 = vrot.slane %v692, 2
    %v694 = vadd.f32 %v692, %v693
    %v695 = vrot.slane %v694, 1
    %v696 = vadd.f32 %v694, %v695
    %v697 = vmul.f32 %v679, 0.033333335
    %v698 = vmul.f32 %v696, 0.033333335
    %v699 = vmul.f32 %v697, %v697
    %v700 = vsub.f32 %v698, %v699
    %v701 = vsub.f32 %v603, %v697
    %v702 = vsub.f32 %v608, %v697
    %v703 = vsub.f32 %v613, %v697
    %v704 = vsub.f32 %v618, %v697
    %v705 = vsub.f32 %v623, %v697
    %v706 = vsub.f32 %v628, %v697
    %v708 = vlaneseq
    %v709 = vshrl.u32 %v708, 7
    %v710 = vsub.s32 0, %v709
    %v711 = vrot.slane %v631, %v710
    %v713 = vmul.f32 %v711, %v701
    %v714 = vmul.f32 %v711, %v702
    %v715 = vmul.f32 %v711, %v703
    %v716 = vmul.f32 %v711, %v704
    %v717 = vmul.f32 %v711, %v705
    %v718 = vmul.f32 %v711, %v706
    %v719 = vadd.f32 %v700, 1e-05
    %v720 = vrsqrt.pop %v719
    %v721 = vmul.f32 %v713, %v720
    %v722 = vmul.f32 %v714, %v720
    %v723 = vmul.f32 %v715, %v720
    %v724 = vmul.f32 %v716, %v720
    %v725 = vmul.f32 %v717, %v720
    %v726 = vmul.f32 %v718, %v720
    %v728 = vlaneseq
    %v729 = vshrl.u32 %v728, 7
    %v730 = vsub.s32 0, %v729
    %v731 = vrot.slane %v632, %v730
    %v733 = vadd.f32 %v721, %v731
    %v734 = vadd.f32 %v722, %v731
    %v735 = vadd.f32 %v723, %v731
    %v736 = vadd.f32 %v724, %v731
    %v737 = vadd.f32 %v725, %v731
    %v738 = vadd.f32 %v726, %v731
    %vm739 = vcmp.gt.f32.partialorder %v733, 0.0
    %vm740 = vcmp.gt.f32.partialorder %v734, 0.0
    %vm741 = vcmp.gt.f32.partialorder %v735, 0.0
    %vm742 = vcmp.gt.f32.partialorder %v736, 0.0
    %vm743 = vcmp.gt.f32.partialorder %v737, 0.0
    %vm744 = vcmp.gt.f32.partialorder %v738, 0.0
    %v745 = vmul.f32 %v733, 1.442695
    %v746 = vpow.pop %v745
    %v747 = vmul.f32 %v734, 1.442695
    %v748 = vpow.pop %v747
    %v749 = vmul.f32 %v735, 1.442695
    %v750 = vpow.pop %v749
    %v751 = vmul.f32 %v736, 1.442695
    %v752 = vpow.pop %v751
    %v753 = vmul.f32 %v737, 1.442695
    %v754 = vpow.pop %v753
    %v755 = vmul.f32 %v738, 1.442695
    %v756 = vpow.pop %v755
    %v757 = vsub.f32 %v746, 1.0
    %v758 = vsub.f32 %v748, 1.0
    %v759 = vsub.f32 %v750, 1.0
    %v760 = vsub.f32 %v752, 1.0
    %v761 = vsub.f32 %v754, 1.0
    %v762 = vsub.f32 %v756, 1.0
    %v763 = vsel %vm739, %v733, %v757
    %v764 = vsel %vm740, %v734, %v758
    %v765 = vsel %vm741, %v735, %v759
    %v766 = vsel %vm742, %v736, %v760
    %v767 = vsel %vm743, %v737, %v761
    %v768 = vsel %vm744, %v738, %v762
    %v769 = vmul.f32 %v763, %v636
    %v770 = vmul.f32 %v764, %v641
    %v771 = vmul.f32 %v765, %v646
    %v772 = vmul.f32 %v766, %v651
    %v773 = vmul.f32 %v767, %v656
    %v774 = vmul.f32 %v768, %v661
    %v775 = vld [vmem:[%s10] sm:$0x1]
    %v776 = vrot.slane %v769, 4
    %v777 = vrot.slane %v770, 4
    %v778 = vrot.slane %v771, 4
    %v779 = vrot.slane %v772, 4
    %v780 = vrot.slane %v773, 4
    %v781 = vrot.slane %v774, 4
    %v782 = vsel %vm290, %v780, %v781
    %v783 = vsel %vm290, %v779, %v780
    %v784 = vsel %vm290, %v778, %v779
    %v785 = vsel %vm290, %v777, %v778
    %v786 = vsel %vm290, %v776, %v777
    %v787 = vsel %vm290, %v781, %v776
    %v788 = vrot.slane %v769, 5
    %v789 = vrot.slane %v770, 5
    %v790 = vrot.slane %v771, 5
    %v791 = vrot.slane %v772, 5
    %v792 = vrot.slane %v773, 5
    %v793 = vrot.slane %v774, 5
    %v794 = vsel %vm212, %v792, %v793
    %v795 = vsel %vm212, %v791, %v792
    %v796 = vsel %vm212, %v790, %v791
    %v797 = vsel %vm212, %v789, %v790
    %v798 = vsel %vm212, %v788, %v789
    %v799 = vsel %vm212, %v793, %v788
    %v800 = vrot.slane %v769, 6
    %v801 = vrot.slane %v770, 6
    %v802 = vrot.slane %v771, 6
    %v803 = vrot.slane %v772, 6
    %v804 = vrot.slane %v773, 6
    %v805 = vrot.slane %v774, 6
    %v806 = vsel %vm225, %v804, %v805
    %v807 = vsel %vm225, %v803, %v804
    %v808 = vsel %vm225, %v802, %v803
    %v809 = vsel %vm225, %v801, %v802
    %v810 = vsel %vm225, %v800, %v801
    %v811 = vsel %vm225, %v805, %v800
    %v812 = vrot.slane %v769, 7
    %v813 = vrot.slane %v770, 7
    %v814 = vrot.slane %v771, 7
    %v815 = vrot.slane %v772, 7
    %v816 = vrot.slane %v773, 7
    %v817 = vrot.slane %v774, 7
    %v818 = vsel %vm238, %v816, %v817
    %v819 = vsel %vm238, %v815, %v816
    %v820 = vsel %vm238, %v814, %v815
    %v821 = vsel %vm238, %v813, %v814
    %v822 = vsel %vm238, %v812, %v813
    %v823 = vsel %vm238, %v817, %v812
    %v824 = vrot.slane %v769, 1
    %v825 = vrot.slane %v770, 1
    %v826 = vrot.slane %v771, 1
    %v827 = vrot.slane %v772, 1
    %v828 = vrot.slane %v773, 1
    %v829 = vrot.slane %v774, 1
    %v830 = vsel %vm251, %v828, %v829
    %v831 = vsel %vm251, %v827, %v828
    %v832 = vsel %vm251, %v826, %v827
    %v833 = vsel %vm251, %v825, %v826
    %v834 = vsel %vm251, %v824, %v825
    %v835 = vsel %vm251, %v829, %v824
    %v836 = vrot.slane %v769, 2
    %v837 = vrot.slane %v770, 2
    %v838 = vrot.slane %v771, 2
    %v839 = vrot.slane %v772, 2
    %v840 = vrot.slane %v773, 2
    %v841 = vrot.slane %v774, 2
    %v842 = vsel %vm264, %v840, %v841
    %v843 = vsel %vm264, %v839, %v840
    %v844 = vsel %vm264, %v838, %v839
    %v845 = vsel %vm264, %v837, %v838
    %v846 = vsel %vm264, %v836, %v837
    %v847 = vsel %vm264, %v841, %v836
    %v848 = vrot.slane %v769, 3
    %v849 = vrot.slane %v770, 3
    %v850 = vrot.slane %v771, 3
    %v851 = vrot.slane %v772, 3
    %v852 = vrot.slane %v773, 3
    %v853 = vrot.slane %v774, 3
    %v854 = vsel %vm277, %v852, %v853
    %v855 = vsel %vm277, %v851, %v852
    %v856 = vsel %vm277, %v850, %v851
    %v857 = vsel %vm277, %v849, %v850
    %v858 = vsel %vm277, %v848, %v849
    %v859 = vsel %vm277, %v853, %v848
    %v860 = vld [vmem:[#allocation2] sm:$0xff]
    %v861 = vld [vmem:[#allocation2 + $0x8] sm:$0xff]
    %v862 = vld [vmem:[#allocation2 + $0x10] sm:$0xff]
    %v863 = vld [vmem:[#allocation2 + $0x18] sm:$0xff]
    %v864 = vld [vmem:[#allocation2 + $0x20] sm:$0xff]
    %v865 = vld [vmem:[#allocation2 + $0x28] sm:$0xff]
    %v866 = vld [vmem:[#allocation2 + $0x30] sm:$0xff]
    %v867 = vld [vmem:[#allocation2 + $0x38] sm:$0xff]
    %v868 = vld [vmem:[#allocation2 + $0x40] sm:$0xff]
    %v869 = vld [vmem:[#allocation2 + $0x48] sm:$0xff]
    %v870 = vld [vmem:[#allocation2 + $0x50] sm:$0xff]
    %v871 = vld [vmem:[#allocation2 + $0x58] sm:$0xff]
    %v872 = vld [vmem:[#allocation2 + $0x60] sm:$0xff]
    %v873 = vld [vmem:[#allocation2 + $0x68] sm:$0xff]
    %v874 = vld [vmem:[#allocation2 + $0x70] sm:$0xff]
    %v875 = vld [vmem:[#allocation2 + $0x78] sm:$0xff]
    %v876 = vld [vmem:[#allocation2 + $0x80] sm:$0xff]
    %v877 = vld [vmem:[#allocation2 + $0x88] sm:$0xff]
    %v878 = vld [vmem:[#allocation2 + $0x90] sm:$0xff]
    %v879 = vld [vmem:[#allocation2 + $0x98] sm:$0xff]
    %v880 = vld [vmem:[#allocation2 + $0xa0] sm:$0xff]
    %v881 = vld [vmem:[#allocation2 + $0xa8] sm:$0xff]
    %v882 = vld [vmem:[#allocation2 + $0xb0] sm:$0xff]
    %v883 = vld [vmem:[#allocation2 + $0xb8] sm:$0xff]
    %v884 = vld [vmem:[#allocation2 + $0xc0] sm:$0xff]
    %v885 = vld [vmem:[#allocation2 + $0xc8] sm:$0xff]
    %v886 = vld [vmem:[#allocation2 + $0xd0] sm:$0xff]
    %v887 = vld [vmem:[#allocation2 + $0xd8] sm:$0xff]
    %v888 = vld [vmem:[#allocation2 + $0xe0] sm:$0xff]
    %v889 = vld [vmem:[#allocation2 + $0xe8] sm:$0xff]
    %v890 = vld [vmem:[#allocation2 + $0xf0] sm:$0xff]
    %v891 = vld [vmem:[#allocation2 + $0xf8] sm:$0xff]
    %892 = vmatprep.subr.mxu0 0.0
    %893 = vmatpush1.msra.mxu0 %v876
    %894 = vmatprep.subr.mxu0 0.0
    %895 = vmatpush1.msra.mxu0 %v877
    %896 = vmatprep.subr.mxu0 0.0
    %897 = vmatpush1.msra.mxu0 %v878
    %898 = vmatprep.subr.mxu0 0.0
    %899 = vmatpush1.msra.mxu0 %v879
    %900 = vmatprep.subr.mxu0 0.0
    %901 = vmatpush1.msra.mxu0 %v880
    %902 = vmatprep.subr.mxu0 0.0
    %903 = vmatpush1.msra.mxu0 %v881
    %904 = vmatprep.subr.mxu0 0.0
    %905 = vmatpush1.msra.mxu0 %v882
    %906 = vmatprep.subr.mxu0 0.0
    %907 = vmatpush1.msra.mxu0 %v883
    %908 = vmatprep.subr.mxu0 0.0
    %909 = vmatpush1.msra.mxu0 %v884
    %910 = vmatprep.subr.mxu0 0.0
    %911 = vmatpush1.msra.mxu0 %v885
    %912 = vmatprep.subr.mxu0 0.0
    %913 = vmatpush1.msra.mxu0 %v886
    %914 = vmatprep.subr.mxu0 0.0
    %915 = vmatpush1.msra.mxu0 %v887
    %916 = vmatprep.subr.mxu0 0.0
    %917 = vmatpush1.msra.mxu0 %v888
    %918 = vmatprep.subr.mxu0 0.0
    %919 = vmatpush1.msra.mxu0 %v889
    %920 = vmatprep.subr.mxu0 0.0
    %921 = vmatpush1.msra.mxu0 %v890
    %922 = vmatprep.subr.mxu0 0.0
    %923 = vmatpush1.msra.mxu0 %v891
    %924 = vmatprep.subr.mxu0 0.0
    %925 = vmatpush1.msra.mxu0 0.0
    %926 = vmatprep.subr.mxu0 0.0
    %927 = vmatpush1.msra.mxu0 0.0
    %928 = vmatprep.subr.mxu0 0.0
    %929 = vmatpush1.msra.mxu0 0.0
    %930 = vmatprep.subr.mxu0 0.0
    %931 = vmatpush1.msra.mxu0 0.0
    %932 = vmatprep.subr.mxu0 0.0
    %933 = vmatpush1.msra.mxu0 0.0
    %934 = vmatprep.subr.mxu0 0.0
    %935 = vmatpush1.msra.mxu0 0.0
    %936 = vmatprep.subr.mxu0 0.0
    %937 = vmatpush1.msra.mxu0 0.0
    %938 = vmatprep.subr.mxu0 0.0
    %939 = vmatpush1.msra.mxu0 0.0
    %940 = vmatprep.subr.mxu0 0.0
    %941 = vmatpush1.msra.mxu0 0.0
    %942 = vmatprep.subr.mxu0 0.0
    %943 = vmatpush1.msra.mxu0 0.0
    %944 = vmatprep.subr.mxu0 0.0
    %945 = vmatpush1.msra.mxu0 0.0
    %946 = vmatprep.subr.mxu0 0.0
    %947 = vmatpush1.msra.mxu0 0.0
    %948 = vmatprep.subr.mxu0 0.0
    %949 = vmatpush1.msra.mxu0 0.0
    %950 = vmatprep.subr.mxu0 0.0
    %951 = vmatpush1.msra.mxu0 0.0
    %952 = vmatprep.subr.mxu0 0.0
    %953 = vmatpush1.msra.mxu0 0.0
    %954 = vmatprep.subr.mxu0 0.0
    %955 = vmatpush1.msra.mxu0 0.0
    %956 = vmatprep.mubr.f32.mxu0 0.0
    %957 = vmatmul.mubr.f32.gmra.mrb[0].mxu0 %v799
    %v958 = vpop.f32.mrb[0].mxu0
    %v959 = vadd.f32 0.0, %v958
    %v960 = vpop.f32.mrb[0].mxu0
    %961 = vmatprep.mubr.f32.mxu0 0.0
    %962 = vmatmul.mubr.f32.gmra.mrb[0].mxu0 %v798
    %v963 = vpop.f32.mrb[0].mxu0
    %v964 = vadd.f32 0.0, %v963
    %v965 = vpop.f32.mrb[0].mxu0
    %966 = vmatprep.mubr.f32.mxu0 0.0
    %967 = vmatmul.mubr.f32.gmra.mrb[0].mxu0 %v797
    %v968 = vpop.f32.mrb[0].mxu0
    %v969 = vadd.f32 0.0, %v968
    %v970 = vpop.f32.mrb[0].mxu0
    %971 = vmatprep.mubr.f32.mxu0 0.0
    %972 = vmatmul.mubr.f32.gmra.mrb[0].mxu0 %v796
    %v973 = vpop.f32.mrb[0].mxu0
    %v974 = vadd.f32 0.0, %v973
    %v975 = vpop.f32.mrb[0].mxu0
    %976 = vmatprep.mubr.f32.mxu0 0.0
    %977 = vmatmul.mubr.f32.gmra.mrb[0].mxu0 %v795
    %v978 = vpop.f32.mrb[0].mxu0
    %v979 = vadd.f32 0.0, %v978
    %v980 = vpop.f32.mrb[0].mxu0
    %981 = vmatprep.mubr.f32.mxu0 0.0
    %982 = vmatmul.mubr.f32.gmra.mrb[0].mxu0 %v794
    %v983 = vpop.f32.mrb[0].mxu0
    %v984 = vadd.f32 0.0, %v983
    %v985 = vpop.f32.mrb[0].mxu0
    %986 = vdwg.mxu0
    %987 = vmatprep.subr.mxu0 0.0
    %988 = vmatpush1.msra.mxu0 %v860
    %989 = vmatprep.subr.mxu0 0.0
    %990 = vmatpush1.msra.mxu0 %v861
    %991 = vmatprep.subr.mxu0 0.0
    %992 = vmatpush1.msra.mxu0 %v862
    %993 = vmatprep.subr.mxu0 0.0
    %994 = vmatpush1.msra.mxu0 %v863
    %995 = vmatprep.subr.mxu0 0.0
    %996 = vmatpush1.msra.mxu0 %v864
    %997 = vmatprep.subr.mxu0 0.0
    %998 = vmatpush1.msra.mxu0 %v865
    %999 = vmatprep.subr.mxu0 0.0
    %1000 = vmatpush1.msra.mxu0 %v866
    %1001 = vmatprep.subr.mxu0 0.0
    %1002 = vmatpush1.msra.mxu0 %v867
    %1003 = vmatprep.subr.mxu0 0.0
    %1004 = vmatpush1.msra.mxu0 %v868
    %1005 = vmatprep.subr.mxu0 0.0
    %1006 = vmatpush1.msra.mxu0 %v869
    %1007 = vmatprep.subr.mxu0 0.0
    %1008 = vmatpush1.msra.mxu0 %v870
    %1009 = vmatprep.subr.mxu0 0.0
    %1010 = vmatpush1.msra.mxu0 %v871
    %1011 = vmatprep.subr.mxu0 0.0
    %1012 = vmatpush1.msra.mxu0 %v872
    %1013 = vmatprep.subr.mxu0 0.0
    %1014 = vmatpush1.msra.mxu0 %v873
    %1015 = vmatprep.subr.mxu0 0.0
    %1016 = vmatpush1.msra.mxu0 %v874
    %1017 = vmatprep.subr.mxu0 0.0
    %1018 = vmatpush1.msra.mxu0 %v875
    %1019 = vmatprep.subr.mxu0 0.0
    %1020 = vmatpush1.msra.mxu0 0.0
    %1021 = vmatprep.subr.mxu0 0.0
    %1022 = vmatpush1.msra.mxu0 0.0
    %1023 = vmatprep.subr.mxu0 0.0
    %1024 = vmatpush1.msra.mxu0 0.0
    %1025 = vmatprep.subr.mxu0 0.0
    %1026 = vmatpush1.msra.mxu0 0.0
    %1027 = vmatprep.subr.mxu0 0.0
    %1028 = vmatpush1.msra.mxu0 0.0
    %1029 = vmatprep.subr.mxu0 0.0
    %1030 = vmatpush1.msra.mxu0 0.0
    %1031 = vmatprep.subr.mxu0 0.0
    %1032 = vmatpush1.msra.mxu0 0.0
    %1033 = vmatprep.subr.mxu0 0.0
    %1034 = vmatpush1.msra.mxu0 0.0
    %1035 = vmatprep.subr.mxu0 0.0
    %1036 = vmatpush1.msra.mxu0 0.0
    %1037 = vmatprep.subr.mxu0 0.0
    %1038 = vmatpush1.msra.mxu0 0.0
    %1039 = vmatprep.subr.mxu0 0.0
    %1040 = vmatpush1.msra.mxu0 0.0
    %1041 = vmatprep.subr.mxu0 0.0
    %1042 = vmatpush1.msra.mxu0 0.0
    %1043 = vmatprep.subr.mxu0 0.0
    %1044 = vmatpush1.msra.mxu0 0.0
    %1045 = vmatprep.subr.mxu0 0.0
    %1046 = vmatpush1.msra.mxu0 0.0
    %1047 = vmatprep.subr.mxu0 0.0
    %1048 = vmatpush1.msra.mxu0 0.0
    %1049 = vmatprep.subr.mxu0 0.0
    %1050 = vmatpush1.msra.mxu0 0.0
    %1051 = vmatprep.mubr.f32.mxu0 0.0
    %1052 = vmatmul.mubr.f32.gmra.mrb[0].mxu0 %v787
    %v1053 = vpop.f32.mrb[0].mxu0
    %v1054 = vadd.f32 %v959, %v1053
    %v1055 = vpop.f32.mrb[0].mxu0
    %1056 = vmatprep.mubr.f32.mxu0 0.0
    %1057 = vmatmul.mubr.f32.gmra.mrb[0].mxu0 %v786
    %v1058 = vpop.f32.mrb[0].mxu0
    %v1059 = vadd.f32 %v964, %v1058
    %v1060 = vpop.f32.mrb[0].mxu0
    %1061 = vmatprep.mubr.f32.mxu0 0.0
    %1062 = vmatmul.mubr.f32.gmra.mrb[0].mxu0 %v785
    %v1063 = vpop.f32.mrb[0].mxu0
    %v1064 = vadd.f32 %v969, %v1063
    %v1065 = vpop.f32.mrb[0].mxu0
    %1066 = vmatprep.mubr.f32.mxu0 0.0
    %1067 = vmatmul.mubr.f32.gmra.mrb[0].mxu0 %v784
    %v1068 = vpop.f32.mrb[0].mxu0
    %v1069 = vadd.f32 %v974, %v1068
    %v1070 = vpop.f32.mrb[0].mxu0
    %1071 = vmatprep.mubr.f32.mxu0 0.0
    %1072 = vmatmul.mubr.f32.gmra.mrb[0].mxu0 %v783
    %v1073 = vpop.f32.mrb[0].mxu0
    %v1074 = vadd.f32 %v979, %v1073
    %v1075 = vpop.f32.mrb[0].mxu0
    %1076 = vmatprep.mubr.f32.mxu0 0.0
    %1077 = vmatmul.mubr.f32.gmra.mrb[0].mxu0 %v782
    %v1078 = vpop.f32.mrb[0].mxu0
    %v1079 = vadd.f32 %v984, %v1078
    %v1080 = vpop.f32.mrb[0].mxu0
    %1081 = vdwg.mxu0
    %v1082 = vld [vmem:[#allocation2 + $0x100] sm:$0xff]
    %v1083 = vld [vmem:[#allocation2 + $0x108] sm:$0xff]
    %v1084 = vld [vmem:[#allocation2 + $0x110] sm:$0xff]
    %v1085 = vld [vmem:[#allocation2 + $0x118] sm:$0xff]
    %v1086 = vld [vmem:[#allocation2 + $0x120] sm:$0xff]
    %v1087 = vld [vmem:[#allocation2 + $0x128] sm:$0xff]
    %v1088 = vld [vmem:[#allocation2 + $0x130] sm:$0xff]
    %v1089 = vld [vmem:[#allocation2 + $0x138] sm:$0xff]
    %v1090 = vld [vmem:[#allocation2 + $0x140] sm:$0xff]
    %v1091 = vld [vmem:[#allocation2 + $0x148] sm:$0xff]
    %v1092 = vld [vmem:[#allocation2 + $0x150] sm:$0xff]
    %v1093 = vld [vmem:[#allocation2 + $0x158] sm:$0xff]
    %v1094 = vld [vmem:[#allocation2 + $0x160] sm:$0xff]
    %v1095 = vld [vmem:[#allocation2 + $0x168] sm:$0xff]
    %v1096 = vld [vmem:[#allocation2 + $0x170] sm:$0xff]
    %v1097 = vld [vmem:[#allocation2 + $0x178] sm:$0xff]
    %1098 = vmatprep.subr.mxu0 0.0
    %1099 = vmatpush1.msra.mxu0 %v1082
    %1100 = vmatprep.subr.mxu0 0.0
    %1101 = vmatpush1.msra.mxu0 %v1083
    %1102 = vmatprep.subr.mxu0 0.0
    %1103 = vmatpush1.msra.mxu0 %v1084
    %1104 = vmatprep.subr.mxu0 0.0
    %1105 = vmatpush1.msra.mxu0 %v1085
    %1106 = vmatprep.subr.mxu0 0.0
    %1107 = vmatpush1.msra.mxu0 %v1086
    %1108 = vmatprep.subr.mxu0 0.0
    %1109 = vmatpush1.msra.mxu0 %v1087
    %1110 = vmatprep.subr.mxu0 0.0
    %1111 = vmatpush1.msra.mxu0 %v1088
    %1112 = vmatprep.subr.mxu0 0.0
    %1113 = vmatpush1.msra.mxu0 %v1089
    %1114 = vmatprep.subr.mxu0 0.0
    %1115 = vmatpush1.msra.mxu0 %v1090
    %1116 = vmatprep.subr.mxu0 0.0
    %1117 = vmatpush1.msra.mxu0 %v1091
    %1118 = vmatprep.subr.mxu0 0.0
    %1119 = vmatpush1.msra.mxu0 %v1092
    %1120 = vmatprep.subr.mxu0 0.0
    %1121 = vmatpush1.msra.mxu0 %v1093
    %1122 = vmatprep.subr.mxu0 0.0
    %1123 = vmatpush1.msra.mxu0 %v1094
    %1124 = vmatprep.subr.mxu0 0.0
    %1125 = vmatpush1.msra.mxu0 %v1095
    %1126 = vmatprep.subr.mxu0 0.0
    %1127 = vmatpush1.msra.mxu0 %v1096
    %1128 = vmatprep.subr.mxu0 0.0
    %1129 = vmatpush1.msra.mxu0 %v1097
    %1130 = vmatprep.subr.mxu0 0.0
    %1131 = vmatpush1.msra.mxu0 0.0
    %1132 = vmatprep.subr.mxu0 0.0
    %1133 = vmatpush1.msra.mxu0 0.0
    %1134 = vmatprep.subr.mxu0 0.0
    %1135 = vmatpush1.msra.mxu0 0.0
    %1136 = vmatprep.subr.mxu0 0.0
    %1137 = vmatpush1.msra.mxu0 0.0
    %1138 = vmatprep.subr.mxu0 0.0
    %1139 = vmatpush1.msra.mxu0 0.0
    %1140 = vmatprep.subr.mxu0 0.0
    %1141 = vmatpush1.msra.mxu0 0.0
    %1142 = vmatprep.subr.mxu0 0.0
    %1143 = vmatpush1.msra.mxu0 0.0
    %1144 = vmatprep.subr.mxu0 0.0
    %1145 = vmatpush1.msra.mxu0 0.0
    %1146 = vmatprep.subr.mxu0 0.0
    %1147 = vmatpush1.msra.mxu0 0.0
    %1148 = vmatprep.subr.mxu0 0.0
    %1149 = vmatpush1.msra.mxu0 0.0
    %1150 = vmatprep.subr.mxu0 0.0
    %1151 = vmatpush1.msra.mxu0 0.0
    %1152 = vmatprep.subr.mxu0 0.0
    %1153 = vmatpush1.msra.mxu0 0.0
    %1154 = vmatprep.subr.mxu0 0.0
    %1155 = vmatpush1.msra.mxu0 0.0
    %1156 = vmatprep.subr.mxu0 0.0
    %1157 = vmatpush1.msra.mxu0 0.0
    %1158 = vmatprep.subr.mxu0 0.0
    %1159 = vmatpush1.msra.mxu0 0.0
    %1160 = vmatprep.subr.mxu0 0.0
    %1161 = vmatpush1.msra.mxu0 0.0
    %1162 = vmatprep.mubr.f32.mxu0 0.0
    %1163 = vmatmul.mubr.f32.gmra.mrb[0].mxu0 %v811
    %v1164 = vpop.f32.mrb[0].mxu0
    %v1165 = vadd.f32 0.0, %v1164
    %v1166 = vpop.f32.mrb[0].mxu0
    %1167 = vmatprep.mubr.f32.mxu0 0.0
    %1168 = vmatmul.mubr.f32.gmra.mrb[0].mxu0 %v810
    %v1169 = vpop.f32.mrb[0].mxu0
    %v1170 = vadd.f32 0.0, %v1169
    %v1171 = vpop.f32.mrb[0].mxu0
    %1172 = vmatprep.mubr.f32.mxu0 0.0
    %1173 = vmatmul.mubr.f32.gmra.mrb[0].mxu0 %v809
    %v1174 = vpop.f32.mrb[0].mxu0
    %v1175 = vadd.f32 0.0, %v1174
    %v1176 = vpop.f32.mrb[0].mxu0
    %1177 = vmatprep.mubr.f32.mxu0 0.0
    %1178 = vmatmul.mubr.f32.gmra.mrb[0].mxu0 %v808
    %v1179 = vpop.f32.mrb[0].mxu0
    %v1180 = vadd.f32 0.0, %v1179
    %v1181 = vpop.f32.mrb[0].mxu0
    %1182 = vmatprep.mubr.f32.mxu0 0.0
    %1183 = vmatmul.mubr.f32.gmra.mrb[0].mxu0 %v807
    %v1184 = vpop.f32.mrb[0].mxu0
    %v1185 = vadd.f32 0.0, %v1184
    %v1186 = vpop.f32.mrb[0].mxu0
    %1187 = vmatprep.mubr.f32.mxu0 0.0
    %1188 = vmatmul.mubr.f32.gmra.mrb[0].mxu0 %v806
    %v1189 = vpop.f32.mrb[0].mxu0
    %v1190 = vadd.f32 0.0, %v1189
    %v1191 = vpop.f32.mrb[0].mxu0
    %1192 = vdwg.mxu0
    %v1193 = vadd.f32 %v1054, %v1165
    %v1194 = vadd.f32 %v1059, %v1170
    %v1195 = vadd.f32 %v1064, %v1175
    %v1196 = vadd.f32 %v1069, %v1180
    %v1197 = vadd.f32 %v1074, %v1185
    %v1198 = vadd.f32 %v1079, %v1190
    %v1199 = vld [vmem:[#allocation2 + $0x180] sm:$0xff]
    %v1200 = vld [vmem:[#allocation2 + $0x188] sm:$0xff]
    %v1201 = vld [vmem:[#allocation2 + $0x190] sm:$0xff]
    %v1202 = vld [vmem:[#allocation2 + $0x198] sm:$0xff]
    %v1203 = vld [vmem:[#allocation2 + $0x1a0] sm:$0xff]
    %v1204 = vld [vmem:[#allocation2 + $0x1a8] sm:$0xff]
    %v1205 = vld [vmem:[#allocation2 + $0x1b0] sm:$0xff]
    %v1206 = vld [vmem:[#allocation2 + $0x1b8] sm:$0xff]
    %v1207 = vld [vmem:[#allocation2 + $0x1c0] sm:$0xff]
    %v1208 = vld [vmem:[#allocation2 + $0x1c8] sm:$0xff]
    %v1209 = vld [vmem:[#allocation2 + $0x1d0] sm:$0xff]
    %v1210 = vld [vmem:[#allocation2 + $0x1d8] sm:$0xff]
    %v1211 = vld [vmem:[#allocation2 + $0x1e0] sm:$0xff]
    %v1212 = vld [vmem:[#allocation2 + $0x1e8] sm:$0xff]
    %v1213 = vld [vmem:[#allocation2 + $0x1f0] sm:$0xff]
    %v1214 = vld [vmem:[#allocation2 + $0x1f8] sm:$0xff]
    %1215 = vmatprep.subr.mxu0 0.0
    %1216 = vmatpush1.msra.mxu0 %v1199
    %1217 = vmatprep.subr.mxu0 0.0
    %1218 = vmatpush1.msra.mxu0 %v1200
    %1219 = vmatprep.subr.mxu0 0.0
    %1220 = vmatpush1.msra.mxu0 %v1201
    %1221 = vmatprep.subr.mxu0 0.0
    %1222 = vmatpush1.msra.mxu0 %v1202
    %1223 = vmatprep.subr.mxu0 0.0
    %1224 = vmatpush1.msra.mxu0 %v1203
    %1225 = vmatprep.subr.mxu0 0.0
    %1226 = vmatpush1.msra.mxu0 %v1204
    %1227 = vmatprep.subr.mxu0 0.0
    %1228 = vmatpush1.msra.mxu0 %v1205
    %1229 = vmatprep.subr.mxu0 0.0
    %1230 = vmatpush1.msra.mxu0 %v1206
    %1231 = vmatprep.subr.mxu0 0.0
    %1232 = vmatpush1.msra.mxu0 %v1207
    %1233 = vmatprep.subr.mxu0 0.0
    %1234 = vmatpush1.msra.mxu0 %v1208
    %1235 = vmatprep.subr.mxu0 0.0
    %1236 = vmatpush1.msra.mxu0 %v1209
    %1237 = vmatprep.subr.mxu0 0.0
    %1238 = vmatpush1.msra.mxu0 %v1210
    %1239 = vmatprep.subr.mxu0 0.0
    %1240 = vmatpush1.msra.mxu0 %v1211
    %1241 = vmatprep.subr.mxu0 0.0
    %1242 = vmatpush1.msra.mxu0 %v1212
    %1243 = vmatprep.subr.mxu0 0.0
    %1244 = vmatpush1.msra.mxu0 %v1213
    %1245 = vmatprep.subr.mxu0 0.0
    %1246 = vmatpush1.msra.mxu0 %v1214
    %1247 = vmatprep.subr.mxu0 0.0
    %1248 = vmatpush1.msra.mxu0 0.0
    %1249 = vmatprep.subr.mxu0 0.0
    %1250 = vmatpush1.msra.mxu0 0.0
    %1251 = vmatprep.subr.mxu0 0.0
    %1252 = vmatpush1.msra.mxu0 0.0
    %1253 = vmatprep.subr.mxu0 0.0
    %1254 = vmatpush1.msra.mxu0 0.0
    %1255 = vmatprep.subr.mxu0 0.0
    %1256 = vmatpush1.msra.mxu0 0.0
    %1257 = vmatprep.subr.mxu0 0.0
    %1258 = vmatpush1.msra.mxu0 0.0
    %1259 = vmatprep.subr.mxu0 0.0
    %1260 = vmatpush1.msra.mxu0 0.0
    %1261 = vmatprep.subr.mxu0 0.0
    %1262 = vmatpush1.msra.mxu0 0.0
    %1263 = vmatprep.subr.mxu0 0.0
    %1264 = vmatpush1.msra.mxu0 0.0
    %1265 = vmatprep.subr.mxu0 0.0
    %1266 = vmatpush1.msra.mxu0 0.0
    %1267 = vmatprep.subr.mxu0 0.0
    %1268 = vmatpush1.msra.mxu0 0.0
    %1269 = vmatprep.subr.mxu0 0.0
    %1270 = vmatpush1.msra.mxu0 0.0
    %1271 = vmatprep.subr.mxu0 0.0
    %1272 = vmatpush1.msra.mxu0 0.0
    %1273 = vmatprep.subr.mxu0 0.0
    %1274 = vmatpush1.msra.mxu0 0.0
    %1275 = vmatprep.subr.mxu0 0.0
    %1276 = vmatpush1.msra.mxu0 0.0
    %1277 = vmatprep.subr.mxu0 0.0
    %1278 = vmatpush1.msra.mxu0 0.0
    %1279 = vmatprep.mubr.f32.mxu0 0.0
    %1280 = vmatmul.mubr.f32.gmra.mrb[0].mxu0 %v823
    %v1281 = vpop.f32.mrb[0].mxu0
    %v1282 = vadd.f32 0.0, %v1281
    %v1283 = vpop.f32.mrb[0].mxu0
    %1284 = vmatprep.mubr.f32.mxu0 0.0
    %1285 = vmatmul.mubr.f32.gmra.mrb[0].mxu0 %v822
    %v1286 = vpop.f32.mrb[0].mxu0
    %v1287 = vadd.f32 0.0, %v1286
    %v1288 = vpop.f32.mrb[0].mxu0
    %1289 = vmatprep.mubr.f32.mxu0 0.0
    %1290 = vmatmul.mubr.f32.gmra.mrb[0].mxu0 %v821
    %v1291 = vpop.f32.mrb[0].mxu0
    %v1292 = vadd.f32 0.0, %v1291
    %v1293 = vpop.f32.mrb[0].mxu0
    %1294 = vmatprep.mubr.f32.mxu0 0.0
    %1295 = vmatmul.mubr.f32.gmra.mrb[0].mxu0 %v820
    %v1296 = vpop.f32.mrb[0].mxu0
    %v1297 = vadd.f32 0.0, %v1296
    %v1298 = vpop.f32.mrb[0].mxu0
    %1299 = vmatprep.mubr.f32.mxu0 0.0
    %1300 = vmatmul.mubr.f32.gmra.mrb[0].mxu0 %v819
    %v1301 = vpop.f32.mrb[0].mxu0
    %v1302 = vadd.f32 0.0, %v1301
    %v1303 = vpop.f32.mrb[0].mxu0
    %1304 = vmatprep.mubr.f32.mxu0 0.0
    %1305 = vmatmul.mubr.f32.gmra.mrb[0].mxu0 %v818
    %v1306 = vpop.f32.mrb[0].mxu0
    %v1307 = vadd.f32 0.0, %v1306
    %v1308 = vpop.f32.mrb[0].mxu0
    %1309 = vdwg.mxu0
    %v1310 = vadd.f32 %v1193, %v1282
    %v1311 = vadd.f32 %v1194, %v1287
    %v1312 = vadd.f32 %v1195, %v1292
    %v1313 = vadd.f32 %v1196, %v1297
    %v1314 = vadd.f32 %v1197, %v1302
    %v1315 = vadd.f32 %v1198, %v1307
    %v1316 = vld [vmem:[#allocation2 + $0x200] sm:$0xff]
    %v1317 = vld [vmem:[#allocation2 + $0x208] sm:$0xff]
    %v1318 = vld [vmem:[#allocation2 + $0x210] sm:$0xff]
    %v1319 = vld [vmem:[#allocation2 + $0x218] sm:$0xff]
    %v1320 = vld [vmem:[#allocation2 + $0x220] sm:$0xff]
    %v1321 = vld [vmem:[#allocation2 + $0x228] sm:$0xff]
    %v1322 = vld [vmem:[#allocation2 + $0x230] sm:$0xff]
    %v1323 = vld [vmem:[#allocation2 + $0x238] sm:$0xff]
    %v1324 = vld [vmem:[#allocation2 + $0x240] sm:$0xff]
    %v1325 = vld [vmem:[#allocation2 + $0x248] sm:$0xff]
    %v1326 = vld [vmem:[#allocation2 + $0x250] sm:$0xff]
    %v1327 = vld [vmem:[#allocation2 + $0x258] sm:$0xff]
    %v1328 = vld [vmem:[#allocation2 + $0x260] sm:$0xff]
    %v1329 = vld [vmem:[#allocation2 + $0x268] sm:$0xff]
    %v1330 = vld [vmem:[#allocation2 + $0x270] sm:$0xff]
    %v1331 = vld [vmem:[#allocation2 + $0x278] sm:$0xff]
    %1332 = vmatprep.subr.mxu0 0.0
    %1333 = vmatpush1.msra.mxu0 %v1316
    %1334 = vmatprep.subr.mxu0 0.0
    %1335 = vmatpush1.msra.mxu0 %v1317
    %1336 = vmatprep.subr.mxu0 0.0
    %1337 = vmatpush1.msra.mxu0 %v1318
    %1338 = vmatprep.subr.mxu0 0.0
    %1339 = vmatpush1.msra.mxu0 %v1319
    %1340 = vmatprep.subr.mxu0 0.0
    %1341 = vmatpush1.msra.mxu0 %v1320
    %1342 = vmatprep.subr.mxu0 0.0
    %1343 = vmatpush1.msra.mxu0 %v1321
    %1344 = vmatprep.subr.mxu0 0.0
    %1345 = vmatpush1.msra.mxu0 %v1322
    %1346 = vmatprep.subr.mxu0 0.0
    %1347 = vmatpush1.msra.mxu0 %v1323
    %1348 = vmatprep.subr.mxu0 0.0
    %1349 = vmatpush1.msra.mxu0 %v1324
    %1350 = vmatprep.subr.mxu0 0.0
    %1351 = vmatpush1.msra.mxu0 %v1325
    %1352 = vmatprep.subr.mxu0 0.0
    %1353 = vmatpush1.msra.mxu0 %v1326
    %1354 = vmatprep.subr.mxu0 0.0
    %1355 = vmatpush1.msra.mxu0 %v1327
    %1356 = vmatprep.subr.mxu0 0.0
    %1357 = vmatpush1.msra.mxu0 %v1328
    %1358 = vmatprep.subr.mxu0 0.0
    %1359 = vmatpush1.msra.mxu0 %v1329
    %1360 = vmatprep.subr.mxu0 0.0
    %1361 = vmatpush1.msra.mxu0 %v1330
    %1362 = vmatprep.subr.mxu0 0.0
    %1363 = vmatpush1.msra.mxu0 %v1331
    %1364 = vmatprep.subr.mxu0 0.0
    %1365 = vmatpush1.msra.mxu0 0.0
    %1366 = vmatprep.subr.mxu0 0.0
    %1367 = vmatpush1.msra.mxu0 0.0
    %1368 = vmatprep.subr.mxu0 0.0
    %1369 = vmatpush1.msra.mxu0 0.0
    %1370 = vmatprep.subr.mxu0 0.0
    %1371 = vmatpush1.msra.mxu0 0.0
    %1372 = vmatprep.subr.mxu0 0.0
    %1373 = vmatpush1.msra.mxu0 0.0
    %1374 = vmatprep.subr.mxu0 0.0
    %1375 = vmatpush1.msra.mxu0 0.0
    %1376 = vmatprep.subr.mxu0 0.0
    %1377 = vmatpush1.msra.mxu0 0.0
    %1378 = vmatprep.subr.mxu0 0.0
    %1379 = vmatpush1.msra.mxu0 0.0
    %1380 = vmatprep.subr.mxu0 0.0
    %1381 = vmatpush1.msra.mxu0 0.0
    %1382 = vmatprep.subr.mxu0 0.0
    %1383 = vmatpush1.msra.mxu0 0.0
    %1384 = vmatprep.subr.mxu0 0.0
    %1385 = vmatpush1.msra.mxu0 0.0
    %1386 = vmatprep.subr.mxu0 0.0
    %1387 = vmatpush1.msra.mxu0 0.0
    %1388 = vmatprep.subr.mxu0 0.0
    %1389 = vmatpush1.msra.mxu0 0.0
    %1390 = vmatprep.subr.mxu0 0.0
    %1391 = vmatpush1.msra.mxu0 0.0
    %1392 = vmatprep.subr.mxu0 0.0
    %1393 = vmatpush1.msra.mxu0 0.0
    %1394 = vmatprep.subr.mxu0 0.0
    %1395 = vmatpush1.msra.mxu0 0.0
    %1396 = vmatprep.mubr.f32.mxu0 0.0
    %1397 = vmatmul.mubr.f32.gmra.mrb[0].mxu0 %v769
    %v1398 = vpop.f32.mrb[0].mxu0
    %v1399 = vadd.f32 0.0, %v1398
    %v1400 = vpop.f32.mrb[0].mxu0
    %1401 = vmatprep.mubr.f32.mxu0 0.0
    %1402 = vmatmul.mubr.f32.gmra.mrb[0].mxu0 %v770
    %v1403 = vpop.f32.mrb[0].mxu0
    %v1404 = vadd.f32 0.0, %v1403
    %v1405 = vpop.f32.mrb[0].mxu0
    %1406 = vmatprep.mubr.f32.mxu0 0.0
    %1407 = vmatmul.mubr.f32.gmra.mrb[0].mxu0 %v771
    %v1408 = vpop.f32.mrb[0].mxu0
    %v1409 = vadd.f32 0.0, %v1408
    %v1410 = vpop.f32.mrb[0].mxu0
    %1411 = vmatprep.mubr.f32.mxu0 0.0
    %1412 = vmatmul.mubr.f32.gmra.mrb[0].mxu0 %v772
    %v1413 = vpop.f32.mrb[0].mxu0
    %v1414 = vadd.f32 0.0, %v1413
    %v1415 = vpop.f32.mrb[0].mxu0
    %1416 = vmatprep.mubr.f32.mxu0 0.0
    %1417 = vmatmul.mubr.f32.gmra.mrb[0].mxu0 %v773
    %v1418 = vpop.f32.mrb[0].mxu0
    %v1419 = vadd.f32 0.0, %v1418
    %v1420 = vpop.f32.mrb[0].mxu0
    %1421 = vmatprep.mubr.f32.mxu0 0.0
    %1422 = vmatmul.mubr.f32.gmra.mrb[0].mxu0 %v774
    %v1423 = vpop.f32.mrb[0].mxu0
    %v1424 = vadd.f32 0.0, %v1423
    %v1425 = vpop.f32.mrb[0].mxu0
    %1426 = vdwg.mxu0
    %v1427 = vadd.f32 %v1310, %v1399
    %v1428 = vadd.f32 %v1311, %v1404
    %v1429 = vadd.f32 %v1312, %v1409
    %v1430 = vadd.f32 %v1313, %v1414
    %v1431 = vadd.f32 %v1314, %v1419
    %v1432 = vadd.f32 %v1315, %v1424
    %v1433 = vld [vmem:[#allocation2 + $0x280] sm:$0xff]
    %v1434 = vld [vmem:[#allocation2 + $0x288] sm:$0xff]
    %v1435 = vld [vmem:[#allocation2 + $0x290] sm:$0xff]
    %v1436 = vld [vmem:[#allocation2 + $0x298] sm:$0xff]
    %v1437 = vld [vmem:[#allocation2 + $0x2a0] sm:$0xff]
    %v1438 = vld [vmem:[#allocation2 + $0x2a8] sm:$0xff]
    %v1439 = vld [vmem:[#allocation2 + $0x2b0] sm:$0xff]
    %v1440 = vld [vmem:[#allocation2 + $0x2b8] sm:$0xff]
    %v1441 = vld [vmem:[#allocation2 + $0x2c0] sm:$0xff]
    %v1442 = vld [vmem:[#allocation2 + $0x2c8] sm:$0xff]
    %v1443 = vld [vmem:[#allocation2 + $0x2d0] sm:$0xff]
    %v1444 = vld [vmem:[#allocation2 + $0x2d8] sm:$0xff]
    %v1445 = vld [vmem:[#allocation2 + $0x2e0] sm:$0xff]
    %v1446 = vld [vmem:[#allocation2 + $0x2e8] sm:$0xff]
    %v1447 = vld [vmem:[#allocation2 + $0x2f0] sm:$0xff]
    %v1448 = vld [vmem:[#allocation2 + $0x2f8] sm:$0xff]
    %1449 = vmatprep.subr.mxu0 0.0
    %1450 = vmatpush1.msra.mxu0 %v1433
    %1451 = vmatprep.subr.mxu0 0.0
    %1452 = vmatpush1.msra.mxu0 %v1434
    %1453 = vmatprep.subr.mxu0 0.0
    %1454 = vmatpush1.msra.mxu0 %v1435
    %1455 = vmatprep.subr.mxu0 0.0
    %1456 = vmatpush1.msra.mxu0 %v1436
    %1457 = vmatprep.subr.mxu0 0.0
    %1458 = vmatpush1.msra.mxu0 %v1437
    %1459 = vmatprep.subr.mxu0 0.0
    %1460 = vmatpush1.msra.mxu0 %v1438
    %1461 = vmatprep.subr.mxu0 0.0
    %1462 = vmatpush1.msra.mxu0 %v1439
    %1463 = vmatprep.subr.mxu0 0.0
    %1464 = vmatpush1.msra.mxu0 %v1440
    %1465 = vmatprep.subr.mxu0 0.0
    %1466 = vmatpush1.msra.mxu0 %v1441
    %1467 = vmatprep.subr.mxu0 0.0
    %1468 = vmatpush1.msra.mxu0 %v1442
    %1469 = vmatprep.subr.mxu0 0.0
    %1470 = vmatpush1.msra.mxu0 %v1443
    %1471 = vmatprep.subr.mxu0 0.0
    %1472 = vmatpush1.msra.mxu0 %v1444
    %1473 = vmatprep.subr.mxu0 0.0
    %1474 = vmatpush1.msra.mxu0 %v1445
    %1475 = vmatprep.subr.mxu0 0.0
    %1476 = vmatpush1.msra.mxu0 %v1446
    %1477 = vmatprep.subr.mxu0 0.0
    %1478 = vmatpush1.msra.mxu0 %v1447
    %1479 = vmatprep.subr.mxu0 0.0
    %1480 = vmatpush1.msra.mxu0 %v1448
    %1481 = vmatprep.subr.mxu0 0.0
    %1482 = vmatpush1.msra.mxu0 0.0
    %1483 = vmatprep.subr.mxu0 0.0
    %1484 = vmatpush1.msra.mxu0 0.0
    %1485 = vmatprep.subr.mxu0 0.0
    %1486 = vmatpush1.msra.mxu0 0.0
    %1487 = vmatprep.subr.mxu0 0.0
    %1488 = vmatpush1.msra.mxu0 0.0
    %1489 = vmatprep.subr.mxu0 0.0
    %1490 = vmatpush1.msra.mxu0 0.0
    %1491 = vmatprep.subr.mxu0 0.0
    %1492 = vmatpush1.msra.mxu0 0.0
    %1493 = vmatprep.subr.mxu0 0.0
    %1494 = vmatpush1.msra.mxu0 0.0
    %1495 = vmatprep.subr.mxu0 0.0
    %1496 = vmatpush1.msra.mxu0 0.0
    %1497 = vmatprep.subr.mxu0 0.0
    %1498 = vmatpush1.msra.mxu0 0.0
    %1499 = vmatprep.subr.mxu0 0.0
    %1500 = vmatpush1.msra.mxu0 0.0
    %1501 = vmatprep.subr.mxu0 0.0
    %1502 = vmatpush1.msra.mxu0 0.0
    %1503 = vmatprep.subr.mxu0 0.0
    %1504 = vmatpush1.msra.mxu0 0.0
    %1505 = vmatprep.subr.mxu0 0.0
    %1506 = vmatpush1.msra.mxu0 0.0
    %1507 = vmatprep.subr.mxu0 0.0
    %1508 = vmatpush1.msra.mxu0 0.0
    %1509 = vmatprep.subr.mxu0 0.0
    %1510 = vmatpush1.msra.mxu0 0.0
    %1511 = vmatprep.subr.mxu0 0.0
    %1512 = vmatpush1.msra.mxu0 0.0
    %1513 = vmatprep.mubr.f32.mxu0 0.0
    %1514 = vmatmul.mubr.f32.gmra.mrb[0].mxu0 %v834
    %v1515 = vpop.f32.mrb[0].mxu0
    %v1516 = vadd.f32 0.0, %v1515
    %v1517 = vpop.f32.mrb[0].mxu0
    %1518 = vmatprep.mubr.f32.mxu0 0.0
    %1519 = vmatmul.mubr.f32.gmra.mrb[0].mxu0 %v833
    %v1520 = vpop.f32.mrb[0].mxu0
    %v1521 = vadd.f32 0.0, %v1520
    %v1522 = vpop.f32.mrb[0].mxu0
    %1523 = vmatprep.mubr.f32.mxu0 0.0
    %1524 = vmatmul.mubr.f32.gmra.mrb[0].mxu0 %v832
    %v1525 = vpop.f32.mrb[0].mxu0
    %v1526 = vadd.f32 0.0, %v1525
    %v1527 = vpop.f32.mrb[0].mxu0
    %1528 = vmatprep.mubr.f32.mxu0 0.0
    %1529 = vmatmul.mubr.f32.gmra.mrb[0].mxu0 %v831
    %v1530 = vpop.f32.mrb[0].mxu0
    %v1531 = vadd.f32 0.0, %v1530
    %v1532 = vpop.f32.mrb[0].mxu0
    %1533 = vmatprep.mubr.f32.mxu0 0.0
    %1534 = vmatmul.mubr.f32.gmra.mrb[0].mxu0 %v830
    %v1535 = vpop.f32.mrb[0].mxu0
    %v1536 = vadd.f32 0.0, %v1535
    %v1537 = vpop.f32.mrb[0].mxu0
    %1538 = vmatprep.mubr.f32.mxu0 0.0
    %1539 = vmatmul.mubr.f32.gmra.mrb[0].mxu0 %v835
    %v1540 = vpop.f32.mrb[0].mxu0
    %v1541 = vadd.f32 0.0, %v1540
    %v1542 = vpop.f32.mrb[0].mxu0
    %1543 = vdwg.mxu0
    %v1544 = vadd.f32 %v1427, %v1516
    %v1545 = vadd.f32 %v1428, %v1521
    %v1546 = vadd.f32 %v1429, %v1526
    %v1547 = vadd.f32 %v1430, %v1531
    %v1548 = vadd.f32 %v1431, %v1536
    %v1549 = vadd.f32 %v1432, %v1541
    %v1550 = vld [vmem:[#allocation2 + $0x300] sm:$0xff]
    %v1551 = vld [vmem:[#allocation2 + $0x308] sm:$0xff]
    %v1552 = vld [vmem:[#allocation2 + $0x310] sm:$0xff]
    %v1553 = vld [vmem:[#allocation2 + $0x318] sm:$0xff]
    %v1554 = vld [vmem:[#allocation2 + $0x320] sm:$0xff]
    %v1555 = vld [vmem:[#allocation2 + $0x328] sm:$0xff]
    %v1556 = vld [vmem:[#allocation2 + $0x330] sm:$0xff]
    %v1557 = vld [vmem:[#allocation2 + $0x338] sm:$0xff]
    %v1558 = vld [vmem:[#allocation2 + $0x340] sm:$0xff]
    %v1559 = vld [vmem:[#allocation2 + $0x348] sm:$0xff]
    %v1560 = vld [vmem:[#allocation2 + $0x350] sm:$0xff]
    %v1561 = vld [vmem:[#allocation2 + $0x358] sm:$0xff]
    %v1562 = vld [vmem:[#allocation2 + $0x360] sm:$0xff]
    %v1563 = vld [vmem:[#allocation2 + $0x368] sm:$0xff]
    %v1564 = vld [vmem:[#allocation2 + $0x370] sm:$0xff]
    %v1565 = vld [vmem:[#allocation2 + $0x378] sm:$0xff]
    %1566 = vmatprep.subr.mxu0 0.0
    %1567 = vmatpush1.msra.mxu0 %v1550
    %1568 = vmatprep.subr.mxu0 0.0
    %1569 = vmatpush1.msra.mxu0 %v1551
    %1570 = vmatprep.subr.mxu0 0.0
    %1571 = vmatpush1.msra.mxu0 %v1552
    %1572 = vmatprep.subr.mxu0 0.0
    %1573 = vmatpush1.msra.mxu0 %v1553
    %1574 = vmatprep.subr.mxu0 0.0
    %1575 = vmatpush1.msra.mxu0 %v1554
    %1576 = vmatprep.subr.mxu0 0.0
    %1577 = vmatpush1.msra.mxu0 %v1555
    %1578 = vmatprep.subr.mxu0 0.0
    %1579 = vmatpush1.msra.mxu0 %v1556
    %1580 = vmatprep.subr.mxu0 0.0
    %1581 = vmatpush1.msra.mxu0 %v1557
    %1582 = vmatprep.subr.mxu0 0.0
    %1583 = vmatpush1.msra.mxu0 %v1558
    %1584 = vmatprep.subr.mxu0 0.0
    %1585 = vmatpush1.msra.mxu0 %v1559
    %1586 = vmatprep.subr.mxu0 0.0
    %1587 = vmatpush1.msra.mxu0 %v1560
    %1588 = vmatprep.subr.mxu0 0.0
    %1589 = vmatpush1.msra.mxu0 %v1561
    %1590 = vmatprep.subr.mxu0 0.0
    %1591 = vmatpush1.msra.mxu0 %v1562
    %1592 = vmatprep.subr.mxu0 0.0
    %1593 = vmatpush1.msra.mxu0 %v1563
    %1594 = vmatprep.subr.mxu0 0.0
    %1595 = vmatpush1.msra.mxu0 %v1564
    %1596 = vmatprep.subr.mxu0 0.0
    %1597 = vmatpush1.msra.mxu0 %v1565
    %1598 = vmatprep.subr.mxu0 0.0
    %1599 = vmatpush1.msra.mxu0 0.0
    %1600 = vmatprep.subr.mxu0 0.0
    %1601 = vmatpush1.msra.mxu0 0.0
    %1602 = vmatprep.subr.mxu0 0.0
    %1603 = vmatpush1.msra.mxu0 0.0
    %1604 = vmatprep.subr.mxu0 0.0
    %1605 = vmatpush1.msra.mxu0 0.0
    %1606 = vmatprep.subr.mxu0 0.0
    %1607 = vmatpush1.msra.mxu0 0.0
    %1608 = vmatprep.subr.mxu0 0.0
    %1609 = vmatpush1.msra.mxu0 0.0
    %1610 = vmatprep.subr.mxu0 0.0
    %1611 = vmatpush1.msra.mxu0 0.0
    %1612 = vmatprep.subr.mxu0 0.0
    %1613 = vmatpush1.msra.mxu0 0.0
    %1614 = vmatprep.subr.mxu0 0.0
    %1615 = vmatpush1.msra.mxu0 0.0
    %1616 = vmatprep.subr.mxu0 0.0
    %1617 = vmatpush1.msra.mxu0 0.0
    %1618 = vmatprep.subr.mxu0 0.0
    %1619 = vmatpush1.msra.mxu0 0.0
    %1620 = vmatprep.subr.mxu0 0.0
    %1621 = vmatpush1.msra.mxu0 0.0
    %1622 = vmatprep.subr.mxu0 0.0
    %1623 = vmatpush1.msra.mxu0 0.0
    %1624 = vmatprep.subr.mxu0 0.0
    %1625 = vmatpush1.msra.mxu0 0.0
    %1626 = vmatprep.subr.mxu0 0.0
    %1627 = vmatpush1.msra.mxu0 0.0
    %1628 = vmatprep.subr.mxu0 0.0
    %1629 = vmatpush1.msra.mxu0 0.0
    %1630 = vmatprep.mubr.f32.mxu0 0.0
    %1631 = vmatmul.mubr.f32.gmra.mrb[0].mxu0 %v846
    %v1632 = vpop.f32.mrb[0].mxu0
    %v1633 = vadd.f32 0.0, %v1632
    %v1634 = vpop.f32.mrb[0].mxu0
    %1635 = vmatprep.mubr.f32.mxu0 0.0
    %1636 = vmatmul.mubr.f32.gmra.mrb[0].mxu0 %v845
    %v1637 = vpop.f32.mrb[0].mxu0
    %v1638 = vadd.f32 0.0, %v1637
    %v1639 = vpop.f32.mrb[0].mxu0
    %1640 = vmatprep.mubr.f32.mxu0 0.0
    %1641 = vmatmul.mubr.f32.gmra.mrb[0].mxu0 %v844
    %v1642 = vpop.f32.mrb[0].mxu0
    %v1643 = vadd.f32 0.0, %v1642
    %v1644 = vpop.f32.mrb[0].mxu0
    %1645 = vmatprep.mubr.f32.mxu0 0.0
    %1646 = vmatmul.mubr.f32.gmra.mrb[0].mxu0 %v843
    %v1647 = vpop.f32.mrb[0].mxu0
    %v1648 = vadd.f32 0.0, %v1647
    %v1649 = vpop.f32.mrb[0].mxu0
    %1650 = vmatprep.mubr.f32.mxu0 0.0
    %1651 = vmatmul.mubr.f32.gmra.mrb[0].mxu0 %v842
    %v1652 = vpop.f32.mrb[0].mxu0
    %v1653 = vadd.f32 0.0, %v1652
    %v1654 = vpop.f32.mrb[0].mxu0
    %1655 = vmatprep.mubr.f32.mxu0 0.0
    %1656 = vmatmul.mubr.f32.gmra.mrb[0].mxu0 %v847
    %v1657 = vpop.f32.mrb[0].mxu0
    %v1658 = vadd.f32 0.0, %v1657
    %v1659 = vpop.f32.mrb[0].mxu0
    %1660 = vdwg.mxu0
    %v1661 = vadd.f32 %v1544, %v1633
    %v1662 = vadd.f32 %v1545, %v1638
    %v1663 = vadd.f32 %v1546, %v1643
    %v1664 = vadd.f32 %v1547, %v1648
    %v1665 = vadd.f32 %v1548, %v1653
    %v1666 = vadd.f32 %v1549, %v1658
    %v1667 = vld [vmem:[#allocation2 + $0x380] sm:$0xff]
    %v1668 = vld [vmem:[#allocation2 + $0x388] sm:$0xff]
    %v1669 = vld [vmem:[#allocation2 + $0x390] sm:$0xff]
    %v1670 = vld [vmem:[#allocation2 + $0x398] sm:$0xff]
    %v1671 = vld [vmem:[#allocation2 + $0x3a0] sm:$0xff]
    %v1672 = vld [vmem:[#allocation2 + $0x3a8] sm:$0xff]
    %v1673 = vld [vmem:[#allocation2 + $0x3b0] sm:$0xff]
    %v1674 = vld [vmem:[#allocation2 + $0x3b8] sm:$0xff]
    %v1675 = vld [vmem:[#allocation2 + $0x3c0] sm:$0xff]
    %v1676 = vld [vmem:[#allocation2 + $0x3c8] sm:$0xff]
    %v1677 = vld [vmem:[#allocation2 + $0x3d0] sm:$0xff]
    %v1678 = vld [vmem:[#allocation2 + $0x3d8] sm:$0xff]
    %v1679 = vld [vmem:[#allocation2 + $0x3e0] sm:$0xff]
    %v1680 = vld [vmem:[#allocation2 + $0x3e8] sm:$0xff]
    %v1681 = vld [vmem:[#allocation2 + $0x3f0] sm:$0xff]
    %v1682 = vld [vmem:[#allocation2 + $0x3f8] sm:$0xff]
    %1683 = vmatprep.subr.mxu0 0.0
    %1684 = vmatpush1.msra.mxu0 %v1667
    %1685 = vmatprep.subr.mxu0 0.0
    %1686 = vmatpush1.msra.mxu0 %v1668
    %1687 = vmatprep.subr.mxu0 0.0
    %1688 = vmatpush1.msra.mxu0 %v1669
    %1689 = vmatprep.subr.mxu0 0.0
    %1690 = vmatpush1.msra.mxu0 %v1670
    %1691 = vmatprep.subr.mxu0 0.0
    %1692 = vmatpush1.msra.mxu0 %v1671
    %1693 = vmatprep.subr.mxu0 0.0
    %1694 = vmatpush1.msra.mxu0 %v1672
    %1695 = vmatprep.subr.mxu0 0.0
    %1696 = vmatpush1.msra.mxu0 %v1673
    %1697 = vmatprep.subr.mxu0 0.0
    %1698 = vmatpush1.msra.mxu0 %v1674
    %1699 = vmatprep.subr.mxu0 0.0
    %1700 = vmatpush1.msra.mxu0 %v1675
    %1701 = vmatprep.subr.mxu0 0.0
    %1702 = vmatpush1.msra.mxu0 %v1676
    %1703 = vmatprep.subr.mxu0 0.0
    %1704 = vmatpush1.msra.mxu0 %v1677
    %1705 = vmatprep.subr.mxu0 0.0
    %1706 = vmatpush1.msra.mxu0 %v1678
    %1707 = vmatprep.subr.mxu0 0.0
    %1708 = vmatpush1.msra.mxu0 %v1679
    %1709 = vmatprep.subr.mxu0 0.0
    %1710 = vmatpush1.msra.mxu0 %v1680
    %1711 = vmatprep.subr.mxu0 0.0
    %1712 = vmatpush1.msra.mxu0 %v1681
    %1713 = vmatprep.subr.mxu0 0.0
    %1714 = vmatpush1.msra.mxu0 %v1682
    %1715 = vmatprep.subr.mxu0 0.0
    %1716 = vmatpush1.msra.mxu0 0.0
    %1717 = vmatprep.subr.mxu0 0.0
    %1718 = vmatpush1.msra.mxu0 0.0
    %1719 = vmatprep.subr.mxu0 0.0
    %1720 = vmatpush1.msra.mxu0 0.0
    %1721 = vmatprep.subr.mxu0 0.0
    %1722 = vmatpush1.msra.mxu0 0.0
    %1723 = vmatprep.subr.mxu0 0.0
    %1724 = vmatpush1.msra.mxu0 0.0
    %1725 = vmatprep.subr.mxu0 0.0
    %1726 = vmatpush1.msra.mxu0 0.0
    %1727 = vmatprep.subr.mxu0 0.0
    %1728 = vmatpush1.msra.mxu0 0.0
    %1729 = vmatprep.subr.mxu0 0.0
    %1730 = vmatpush1.msra.mxu0 0.0
    %1731 = vmatprep.subr.mxu0 0.0
    %1732 = vmatpush1.msra.mxu0 0.0
    %1733 = vmatprep.subr.mxu0 0.0
    %1734 = vmatpush1.msra.mxu0 0.0
    %1735 = vmatprep.subr.mxu0 0.0
    %1736 = vmatpush1.msra.mxu0 0.0
    %1737 = vmatprep.subr.mxu0 0.0
    %1738 = vmatpush1.msra.mxu0 0.0
    %1739 = vmatprep.subr.mxu0 0.0
    %1740 = vmatpush1.msra.mxu0 0.0
    %1741 = vmatprep.subr.mxu0 0.0
    %1742 = vmatpush1.msra.mxu0 0.0
    %1743 = vmatprep.subr.mxu0 0.0
    %1744 = vmatpush1.msra.mxu0 0.0
    %1745 = vmatprep.subr.mxu0 0.0
    %1746 = vmatpush1.msra.mxu0 0.0
    %1747 = vmatprep.mubr.f32.mxu0 0.0
    %1748 = vmatmul.mubr.f32.gmra.mrb[0].mxu0 %v858
    %v1749 = vpop.f32.mrb[0].mxu0
    %v1750 = vadd.f32 0.0, %v1749
    %v1751 = vpop.f32.mrb[0].mxu0
    %1752 = vmatprep.mubr.f32.mxu0 0.0
    %1753 = vmatmul.mubr.f32.gmra.mrb[0].mxu0 %v857
    %v1754 = vpop.f32.mrb[0].mxu0
    %v1755 = vadd.f32 0.0, %v1754
    %v1756 = vpop.f32.mrb[0].mxu0
    %1757 = vmatprep.mubr.f32.mxu0 0.0
    %1758 = vmatmul.mubr.f32.gmra.mrb[0].mxu0 %v856
    %v1759 = vpop.f32.mrb[0].mxu0
    %v1760 = vadd.f32 0.0, %v1759
    %v1761 = vpop.f32.mrb[0].mxu0
    %1762 = vmatprep.mubr.f32.mxu0 0.0
    %1763 = vmatmul.mubr.f32.gmra.mrb[0].mxu0 %v855
    %v1764 = vpop.f32.mrb[0].mxu0
    %v1765 = vadd.f32 0.0, %v1764
    %v1766 = vpop.f32.mrb[0].mxu0
    %1767 = vmatprep.mubr.f32.mxu0 0.0
    %1768 = vmatmul.mubr.f32.gmra.mrb[0].mxu0 %v854
    %v1769 = vpop.f32.mrb[0].mxu0
    %v1770 = vadd.f32 0.0, %v1769
    %v1771 = vpop.f32.mrb[0].mxu0
    %1772 = vmatprep.mubr.f32.mxu0 0.0
    %1773 = vmatmul.mubr.f32.gmra.mrb[0].mxu0 %v859
    %v1774 = vpop.f32.mrb[0].mxu0
    %v1775 = vadd.f32 0.0, %v1774
    %v1776 = vpop.f32.mrb[0].mxu0
    %1777 = vdwg.mxu0
    %v1778 = vadd.f32 %v1661, %v1750
    %v1779 = vadd.f32 %v1662, %v1755
    %v1780 = vadd.f32 %v1663, %v1760
    %v1781 = vadd.f32 %v1664, %v1765
    %v1782 = vadd.f32 %v1665, %v1770
    %v1783 = vadd.f32 %v1666, %v1775
    %v1785 = vlaneseq
    %v1786 = vshrl.u32 %v1785, 7
    %v1787 = vsub.s32 0, %v1786
    %v1788 = vrot.slane %v775, %v1787
    %v1790 = vadd.f32 %v1778, %v1788
    %v1791 = vadd.f32 %v1779, %v1788
    %v1792 = vadd.f32 %v1780, %v1788
    %v1793 = vadd.f32 %v1781, %v1788
    %v1794 = vadd.f32 %v1782, %v1788
    %v1795 = vadd.f32 %v1783, %v1788
    %v1796 = vadd.f32 %v1790, %v175
    %v1797 = vadd.f32 %v1791, %v180
    %v1798 = vadd.f32 %v1792, %v185
    %v1799 = vadd.f32 %v1793, %v190
    %v1800 = vadd.f32 %v1794, %v195
    %v1801 = vadd.f32 %v1795, %v200
    %v1802 = vld [vmem:[%s11] sm:$0x1]
    %v1803 = vld [vmem:[%s12] sm:$0x1]
    %1805 = vset.pattern.permute.xlu0 0
    %1806 = vperm.xlu0 %1805, %v71
    %v1807 = vpop.permute.xlu0 %1806
    %1810 = vset.pattern.permute.xlu0 0
    %1811 = vperm.xlu0 %1810, %v72
    %v1812 = vpop.permute.xlu0 %1811
    %1815 = vset.pattern.permute.xlu0 0
    %1816 = vperm.xlu0 %1815, %v73
    %v1817 = vpop.permute.xlu0 %1816
    %1820 = vset.pattern.permute.xlu0 0
    %1821 = vperm.xlu0 %1820, %v74
    %v1822 = vpop.permute.xlu0 %1821
    %1825 = vset.pattern.permute.xlu0 0
    %1826 = vperm.xlu0 %1825, %v75
    %v1827 = vpop.permute.xlu0 %1826
    %1830 = vset.pattern.permute.xlu0 0
    %1831 = vperm.xlu0 %1830, %v76
    %v1832 = vpop.permute.xlu0 %1831
    %v1834 = vmul.f32 %v1796, %v1807
    %v1835 = vmul.f32 %v1797, %v1812
    %v1836 = vmul.f32 %v1798, %v1817
    %v1837 = vmul.f32 %v1799, %v1822
    %v1838 = vmul.f32 %v1800, %v1827
    %v1839 = vmul.f32 %v1801, %v1832
    %v1840 = vadd.f32 %v1834, %v1835
    %v1841 = vadd.f32 %v1840, %v1836
    %v1842 = vadd.f32 %v1841, %v1837
    %v1843 = vadd.f32 %v1842, %v1838
    %v1844 = vadd.f32 %v1843, %v1839
    %v1845 = vrot.slane %v1844, 4
    %v1846 = vadd.f32 %v1844, %v1845
    %v1847 = vrot.slane %v1846, 2
    %v1848 = vadd.f32 %v1846, %v1847
    %v1849 = vrot.slane %v1848, 1
    %v1850 = vadd.f32 %v1848, %v1849
    %v1851 = vmul.f32 %v1834, %v1834
    %v1852 = vmul.f32 %v1835, %v1835
    %v1853 = vmul.f32 %v1836, %v1836
    %v1854 = vmul.f32 %v1837, %v1837
    %v1855 = vmul.f32 %v1838, %v1838
    %v1856 = vmul.f32 %v1839, %v1839
    %v1857 = vadd.f32 %v1851, %v1852
    %v1858 = vadd.f32 %v1857, %v1853
    %v1859 = vadd.f32 %v1858, %v1854
    %v1860 = vadd.f32 %v1859, %v1855
    %v1861 = vadd.f32 %v1860, %v1856
    %v1862 = vrot.slane %v1861, 4
    %v1863 = vadd.f32 %v1861, %v1862
    %v1864 = vrot.slane %v1863, 2
    %v1865 = vadd.f32 %v1863, %v1864
    %v1866 = vrot.slane %v1865, 1
    %v1867 = vadd.f32 %v1865, %v1866
    %v1868 = vmul.f32 %v1850, 0.03125
    %v1869 = vmul.f32 %v1867, 0.03125
    %v1870 = vmul.f32 %v1868, %v1868
    %v1871 = vsub.f32 %v1869, %v1870
    %v1872 = vsub.f32 %v1796, %v1868
    %v1873 = vsub.f32 %v1797, %v1868
    %v1874 = vsub.f32 %v1798, %v1868
    %v1875 = vsub.f32 %v1799, %v1868
    %v1876 = vsub.f32 %v1800, %v1868
    %v1877 = vsub.f32 %v1801, %v1868
    %v1879 = vlaneseq
    %v1880 = vshrl.u32 %v1879, 7
    %v1881 = vsub.s32 0, %v1880
    %v1882 = vrot.slane %v1802, %v1881
    %v1884 = vmul.f32 %v1882, %v1872
    %v1885 = vmul.f32 %v1882, %v1873
    %v1886 = vmul.f32 %v1882, %v1874
    %v1887 = vmul.f32 %v1882, %v1875
    %v1888 = vmul.f32 %v1882, %v1876
    %v1889 = vmul.f32 %v1882, %v1877
    %v1890 = vadd.f32 %v1871, 1e-05
    %v1891 = vrsqrt.pop %v1890
    %v1892 = vmul.f32 %v1884, %v1891
    %v1893 = vmul.f32 %v1885, %v1891
    %v1894 = vmul.f32 %v1886, %v1891
    %v1895 = vmul.f32 %v1887, %v1891
    %v1896 = vmul.f32 %v1888, %v1891
    %v1897 = vmul.f32 %v1889, %v1891
    %v1899 = vlaneseq
    %v1900 = vshrl.u32 %v1899, 7
    %v1901 = vsub.s32 0, %v1900
    %v1902 = vrot.slane %v1803, %v1901
    %v1904 = vadd.f32 %v1892, %v1902
    %v1905 = vadd.f32 %v1893, %v1902
    %v1906 = vadd.f32 %v1894, %v1902
    %v1907 = vadd.f32 %v1895, %v1902
    %v1908 = vadd.f32 %v1896, %v1902
    %v1909 = vadd.f32 %v1897, %v1902
    %vm1910 = vcmp.gt.f32.partialorder %v1904, 0.0
    %vm1911 = vcmp.gt.f32.partialorder %v1905, 0.0
    %vm1912 = vcmp.gt.f32.partialorder %v1906, 0.0
    %vm1913 = vcmp.gt.f32.partialorder %v1907, 0.0
    %vm1914 = vcmp.gt.f32.partialorder %v1908, 0.0
    %vm1915 = vcmp.gt.f32.partialorder %v1909, 0.0
    %v1916 = vmul.f32 %v1904, 1.442695
    %v1917 = vpow.pop %v1916
    %v1918 = vmul.f32 %v1905, 1.442695
    %v1919 = vpow.pop %v1918
    %v1920 = vmul.f32 %v1906, 1.442695
    %v1921 = vpow.pop %v1920
    %v1922 = vmul.f32 %v1907, 1.442695
    %v1923 = vpow.pop %v1922
    %v1924 = vmul.f32 %v1908, 1.442695
    %v1925 = vpow.pop %v1924
    %v1926 = vmul.f32 %v1909, 1.442695
    %v1927 = vpow.pop %v1926
    %v1928 = vsub.f32 %v1917, 1.0
    %v1929 = vsub.f32 %v1919, 1.0
    %v1930 = vsub.f32 %v1921, 1.0
    %v1931 = vsub.f32 %v1923, 1.0
    %v1932 = vsub.f32 %v1925, 1.0
    %v1933 = vsub.f32 %v1927, 1.0
    %v1934 = vsel %vm1910, %v1904, %v1928
    %v1935 = vsel %vm1911, %v1905, %v1929
    %v1936 = vsel %vm1912, %v1906, %v1930
    %v1937 = vsel %vm1913, %v1907, %v1931
    %v1938 = vsel %vm1914, %v1908, %v1932
    %v1939 = vsel %vm1915, %v1909, %v1933
    %1940 = vst [vmem:[#allocation5] sm:$0xff] %v1934
    %1941 = vst [vmem:[#allocation5 + $0x8] sm:$0xff] %v1935
    %1942 = vst [vmem:[#allocation5 + $0x10] sm:$0xff] %v1936
    %1943 = vst [vmem:[#allocation5 + $0x18] sm:$0xff] %v1937
    %1944 = vst [vmem:[#allocation5 + $0x20] sm:$0xff] %v1938
    %1945 = vst [vmem:[#allocation5 + $0x28] sm:$0xff] %v1939
    // Predicated region
    $region58: #{tpu_custom_call.1} parent=1 // pred_check
      _
    $region59: #{tpu_custom_call.1} parent=1 // pred_check_branch
      %1947 = sbr.rel (0) target = $region61
    $region60: #{tpu_custom_call.1} parent=1 // pred_region
      %s1949 = ssub.s32 768, 768
      %1950 = vsyncadd [#allocation4], %s1949
      %s1951 = sshll.u32 [#allocation5], 4
      %s1952 = int_to_ptr.vmem [resolvable:$true] %s1951
      %1957 = dma.vmem_to_hbm [thread:$0]  %s1952, 768, %s13, [#allocation4], 128, 128, 8
    $region61: #{tpu_custom_call.1} parent=1 // pred_fallthru
      _
    // Predicated region
    $region62: #{tpu_custom_call.1} parent=1 // pred_check
      _
    $region63: #{tpu_custom_call.1} parent=1 // pred_check_branch
      %1959 = sbr.rel (0) target = $region65
    $region64: #{tpu_custom_call.1} parent=1 // pred_region
      %1960 = dma.done [#allocation4], 768
    $region65: #{tpu_custom_call.1} parent=1 // pred_fallthru
      _
    %1961 = vsyncpa [#allocation3], 1
    %1962 = vsyncpa [#allocation4], 1

</llo_original>
